<compile_context>
chip_gen: v7x
topology: tpu7x:2x2x1
jax: 0.10.0
libtpu: 0.0.40
codegen_flags: <defaults>
</compile_context>

<pallas_src>
import functools

import jax
import jax.numpy as jnp
from jax.experimental import pallas as pl
from jax.experimental.pallas import tpu as pltpu


def _round_up(v, m):
    return ((v + m - 1) // m) * m


def _pad2(a, rows, cols):
    return jnp.pad(a, ((0, rows - a.shape[0]), (0, cols - a.shape[1])))


# ------------------------------ Pallas kernel ------------------------------ #

def _fused_gnn_kernel(num_layers, *refs):
    """Fused forward pass of the whole network (single invocation, no grid).

    refs layout:
      a_hbm               [NP, NP] bf16  row-normalized adjacency (HBM, pl.ANY)
      x_ref               [NP, FP] bf16  input node features (VMEM)
      (wcat_i, b_i) * L                  bf16 [F, 2C] fused weight, f32 [1, C] fused bias
      head_w, head_b                     bf16 head weight, f32 head bias
      out_ref             [NP, HP] f32   output (VMEM)
      a_vmem              [NP, NP] bf16  VMEM scratch for the adjacency
      a_sem                              DMA completion semaphore
    """
    a_hbm, x_ref = refs[0], refs[1]
    lrefs = refs[2:2 + 2 * num_layers]
    hw_ref = refs[2 + 2 * num_layers]
    hb_ref = refs[3 + 2 * num_layers]
    out_ref = refs[4 + 2 * num_layers]
    a_vmem = refs[5 + 2 * num_layers]
    a_sem = refs[6 + 2 * num_layers]

    # Kick off the dominant NP^2 adjacency DMA; it is hidden behind layer 0's
    # feature matmul, which does not need A.
    a_copy = pltpu.make_async_copy(a_hbm, a_vmem, a_sem)
    a_copy.start()

    cur = x_ref[...]                     # bf16, stays resident in VMEM between layers
    a = None
    for i in range(num_layers):
        wcat = lrefs[2 * i][...]         # bf16 [F, 2C] = [W_l | W_r + W_lin]
        b = lrefs[2 * i + 1][...]        # f32  [1, C]  = b_l + b_lin
        fin, c2 = wcat.shape
        c = c2 // 2

        if i == 0 or c <= fin:
            # Shared-LHS fusion: one MXU pass produces both the lin_l operand of
            # the aggregation and the folded self/skip term.
            cat = jnp.dot(cur, wcat, preferred_element_type=jnp.float32)
            if i == 0:
                a_copy.wait()            # adjacency DMA overlapped with `cat`
                a = a_vmem[...]
            conv = jnp.dot(a, cat[:, :c].astype(jnp.bfloat16),
                           preferred_element_type=jnp.float32)
            h = conv + cat[:, c:] + b
        else:
            # When C > F it is cheaper to aggregate first: (A @ x) @ W_l.
            agg = jnp.dot(a, cur, preferred_element_type=jnp.float32)
            conv = jnp.dot(agg.astype(jnp.bfloat16), wcat[:, :c],
                           preferred_element_type=jnp.float32)
            h = (conv
                 + jnp.dot(cur, wcat[:, c:], preferred_element_type=jnp.float32)
                 + b)

        if i != num_layers - 1:
            h = jnp.maximum(h, 0.0)      # ReLU kept in f32
        cur = h.astype(jnp.bfloat16)     # VMEM-resident, bf16 for the next MXU op

    out_ref[...] = (jnp.dot(cur, hw_ref[...], preferred_element_type=jnp.float32)
                    + hb_ref[...]).astype(out_ref.dtype)


_VMEM = pl.BlockSpec(memory_space=pltpu.MemorySpace.VMEM)
_ANY = pl.BlockSpec(memory_space=pl.ANY)


def _vmem_limit_bytes(np_, fp, cdims, hp):
    """Scoped-VMEM limit derived from the actual resident buffer sizes."""
    a_bytes = np_ * np_ * 2                         # resident bf16 adjacency scratch
    x_bytes = np_ * fp * 2
    w_bytes = 0
    fin = fp
    widest = max(fp, hp)
    for c in cdims:
        w_bytes += fin * (2 * c) * 2 + c * 4        # bf16 W_cat + f32 bias
        widest = max(widest, 2 * c)
        fin = c
    w_bytes += fin * hp * 2 + hp * 4                # head
    out_bytes = np_ * hp * 4
    act_bytes = 4 * np_ * widest * 4                # a few f32 temporaries of the widest layer
    total = a_bytes + 2 * (x_bytes + w_bytes + out_bytes) + act_bytes
    # 1.5x headroom for compiler temporaries; floor 32 MiB, cap under the v5e/v6e
    # 128 MiB physical VMEM.
    # TODO(synk): on v7x (64 MiB physical) switch to the streamed-A path once
    #             this exceeds ~48 MiB.
    return min(max(int(total * 1.5) + (4 << 20), 32 << 20), 100 << 20)


def _cost_estimate(np_, fp, cdims, hp):
    flops = 0
    fin = fp
    for c in cdims:
        flops += 2 * np_ * fin * (2 * c)            # cur @ [W_l | W_rl]
        flops += 2 * np_ * np_ * c                  # A @ (x W_l)
        fin = c
    flops += 2 * np_ * fin * hp                     # head
    bytes_accessed = np_ * np_ * 2 + np_ * fp * 2 + np_ * hp * 4
    fin = fp
    for c in cdims:
        bytes_accessed += fin * (2 * c) * 2 + c * 4
        fin = c
    bytes_accessed += fin * hp * 2 + hp * 4
    return pl.CostEstimate(flops=flops, transcendentals=0,
                           bytes_accessed=bytes_accessed)


def fused_forward(a_bf16, x_bf16, flat_layer_args, head_w, head_b,
                  vmem_limit, cost):
    num_layers = len(flat_layer_args) // 2
    np_, hp = x_bf16.shape[0], head_w.shape[1]
    n_vmem_inputs = 1 + len(flat_layer_args) + 2
    return pl.pallas_call(
        functools.partial(_fused_gnn_kernel, num_layers),
        out_shape=jax.ShapeDtypeStruct((np_, hp), jnp.float32),
        in_specs=[_ANY] + [_VMEM] * n_vmem_inputs,
        out_specs=_VMEM,
        scratch_shapes=[pltpu.VMEM((np_, np_), jnp.bfloat16),
                        pltpu.SemaphoreType.DMA(())],
        compiler_params=pltpu.CompilerParams(vmem_limit_bytes=vmem_limit),
        cost_estimate=cost,
    )(a_bf16, x_bf16, *flat_layer_args, head_w, head_b)


# ------------------------------ Model wrapper ------------------------------ #

def init_params(key, in_dim, channel_counts, head_dim):
    """Deterministic synthetic parameters (shapes match the PyTorch module)."""
    params = []
    f_in = in_dim
    for c in channel_counts:
        key, k1, k2, k3, k4, k5 = jax.random.split(key, 6)
        scale = 1.0 / jnp.sqrt(jnp.float32(f_in))
        params.append(dict(
            w_l=jax.random.normal(k1, (f_in, c), jnp.float32) * scale,    # SAGE lin_l
            w_r=jax.random.normal(k2, (f_in, c), jnp.float32) * scale,    # SAGE lin_r (no bias)
            b_l=jax.random.normal(k3, (1, c), jnp.float32) * 0.1,         # SAGE lin_l bias
            w_lin=jax.random.normal(k4, (f_in, c), jnp.float32) * scale,  # skip Linear
            b_lin=jax.random.normal(k5, (1, c), jnp.float32) * 0.1,       # skip Linear bias
        ))
        f_in = c
    key, k1, k2 = jax.random.split(key, 3)
    scale = 1.0 / jnp.sqrt(jnp.float32(f_in))
    head = dict(
        w=jax.random.normal(k1, (f_in, head_dim), jnp.float32) * scale,
        b=jax.random.normal(k2, (1, head_dim), jnp.float32) * 0.1,
    )
    return params, head


def build_mean_adjacency(edge_index, num_nodes):
    """Dense row-normalized adjacency for mean aggregation (glue, plain JAX)."""
    src, dst = edge_index[0], edge_index[1]
    a = jnp.zeros((num_nodes, num_nodes), jnp.float32)
    a = a.at[dst, src].add(1.0)                      # A[i, j] = #edges j -> i
    deg = a.sum(axis=1, keepdims=True)
    return a / jnp.maximum(deg, 1.0)                 # isolated nodes -> zero agg


def sparse_graph_network(x, edge_index, layer_params, head_params):
    n, f = x.shape
    head_dim = head_params["w"].shape[1]

    # Node dim -> multiple of 256 (full 256-wide MXU contraction on v6e/v7x);
    # feature/channel/head dims -> multiple of 128 (lane-dense operands/stores).
    np_ = _round_up(n, 256)
    fp = _round_up(f, 128)

    # NOTE: A and all matmul operands run in bf16 with f32 accumulation; keep an
    # f32 path (or loosened tolerances) when comparing against the f32 reference.
    a_bf16 = _pad2(build_mean_adjacency(edge_index, n), np_, np_).astype(jnp.bfloat16)
    x_bf16 = _pad2(x.astype(jnp.float32), np_, fp).astype(jnp.bfloat16)

    flat = []
    cdims = []
    fin_p = fp
    for p in layer_params:
        c = p["w_l"].shape[1]
        cp = _round_up(c, 128)
        w_cat = jnp.concatenate(
            [_pad2(p["w_l"], fin_p, cp),                  # SAGE lin_l
             _pad2(p["w_r"] + p["w_lin"], fin_p, cp)],    # lin_r + skip Linear folded
            axis=1).astype(jnp.bfloat16)
        flat.append(w_cat)
        flat.append(_pad2(p["b_l"] + p["b_lin"], 1, cp))  # f32 fused bias
        cdims.append(cp)
        fin_p = cp

    hp = _round_up(head_dim, 128)
    head_w = _pad2(head_params["w"], fin_p, hp).astype(jnp.bfloat16)
    head_b = _pad2(head_params["b"], 1, hp)

    vmem_limit = _vmem_limit_bytes(np_, fp, cdims, hp)
    cost = _cost_estimate(np_, fp, cdims, hp)

    out_pad = fused_forward(a_bf16, x_bf16, flat, head_w, head_b,
                            vmem_limit, cost)
    return out_pad[:n, :head_dim]


# ---------------------------------- Main ----------------------------------- #

if __name__ == "__main__":
    N = 16          # number of graph nodes
    F_IN = 16       # input feature dim
    CHANNELS = [32, 32]
    HEAD_DIM = 8
    E = 48          # number of edges

    key = jax.random.PRNGKey(0)
    kx, ke_src, ke_dst, kp = jax.random.split(key, 4)

    x = jax.random.normal(kx, (N, F_IN), jnp.float32)
    edge_index = jnp.stack([
        jax.random.randint(ke_src, (E,), 0, N, dtype=jnp.int32),
        jax.random.randint(ke_dst, (E,), 0, N, dtype=jnp.int32),
    ])  # [2, E], row 0 = source, row 1 = target (PyG convention)

    layer_params, head_params = init_params(kp, F_IN, CHANNELS, HEAD_DIM)

    out = sparse_graph_network(x, edge_index, layer_params, head_params)
    out = jax.block_until_ready(out)
    assert out.shape == (N, HEAD_DIM)
    print("KERNEL_OK")
</pallas_src>

<mosaic_0001>
module attributes {stable_mosaic.version = 11 : i64} {
  func.func @_fused_gnn_kernel(%arg0: memref<256x256xbf16, #tpu.memory_space<any>>, %arg1: memref<256x128xbf16, #tpu.memory_space<vmem>>, %arg2: memref<128x256xbf16, #tpu.memory_space<vmem>>, %arg3: memref<1x128xf32, #tpu.memory_space<vmem>>, %arg4: memref<128x256xbf16, #tpu.memory_space<vmem>>, %arg5: memref<1x128xf32, #tpu.memory_space<vmem>>, %arg6: memref<128x128xbf16, #tpu.memory_space<vmem>>, %arg7: memref<1x128xf32, #tpu.memory_space<vmem>>, %arg8: memref<256x128xf32, #tpu.memory_space<vmem>>, %arg9: memref<256x256xbf16, #tpu.memory_space<vmem>>, %arg10: memref<!tpu.dma_semaphore, #tpu.memory_space<semaphore_mem>>) attributes {dimension_semantics = [], scalar_prefetch = 0 : i64, scratch_operands = 2 : i64, tpu.core_type = #tpu.core_type<tc>} {
    tpu.enqueue_dma source(%arg0 : memref<256x256xbf16, #tpu.memory_space<any>>) target(%arg9 : memref<256x256xbf16, #tpu.memory_space<vmem>>) target_semaphore(%arg10 : memref<!tpu.dma_semaphore, #tpu.memory_space<semaphore_mem>>)
    %c0 = arith.constant 0 : index
    %c0_0 = arith.constant 0 : index
    %0 = vector.load %arg1[%c0, %c0_0] : memref<256x128xbf16, #tpu.memory_space<vmem>>, vector<256x128xbf16>
    %c0_1 = arith.constant 0 : index
    %c0_2 = arith.constant 0 : index
    %1 = vector.load %arg2[%c0_1, %c0_2] : memref<128x256xbf16, #tpu.memory_space<vmem>>, vector<128x256xbf16>
    %c0_3 = arith.constant 0 : index
    %c0_4 = arith.constant 0 : index
    %2 = vector.load %arg3[%c0_3, %c0_4] : memref<1x128xf32, #tpu.memory_space<vmem>>, vector<1x128xf32>
    %cst = arith.constant dense<0.000000e+00> : vector<256x256xf32>
    %3 = tpu.matmul %0, %1, %cst {dimension_numbers = #tpu.dot_dimension_numbers<[1], [0], [0], [1], [0, 0, 1, 1], [], []>} : vector<256x128xbf16>, vector<128x256xbf16>, vector<256x256xf32> -> vector<256x256xf32>
    tpu.wait_dma2 semaphore(%arg10 : memref<!tpu.dma_semaphore, #tpu.memory_space<semaphore_mem>>) src(%arg0 : memref<256x256xbf16, #tpu.memory_space<any>>) dst(%arg9 : memref<256x256xbf16, #tpu.memory_space<vmem>>)
    %c0_5 = arith.constant 0 : index
    %c0_6 = arith.constant 0 : index
    %4 = vector.load %arg9[%c0_5, %c0_6] : memref<256x256xbf16, #tpu.memory_space<vmem>>, vector<256x256xbf16>
    %5 = vector.extract_strided_slice %3 {offsets = [0, 0], sizes = [256, 128], strides = [1, 1]} : vector<256x256xf32> to vector<256x128xf32>
    %6 = arith.truncf %5 : vector<256x128xf32> to vector<256x128xbf16>
    %cst_7 = arith.constant dense<0.000000e+00> : vector<256x128xf32>
    %7 = tpu.matmul %4, %6, %cst_7 {dimension_numbers = #tpu.dot_dimension_numbers<[1], [0], [0], [1], [0, 0, 1, 1], [], []>} : vector<256x256xbf16>, vector<256x128xbf16>, vector<256x128xf32> -> vector<256x128xf32>
    %8 = vector.extract_strided_slice %3 {offsets = [0, 128], sizes = [256, 128], strides = [1, 1]} : vector<256x256xf32> to vector<256x128xf32>
    %9 = arith.addf %7, %8 : vector<256x128xf32>
    %10 = vector.broadcast %2 : vector<1x128xf32> to vector<256x128xf32>
    %11 = arith.addf %9, %10 : vector<256x128xf32>
    %cst_8 = arith.constant 0.000000e+00 : f32
    %12 = vector.broadcast %cst_8 : f32 to vector<256x128xf32>
    %13 = arith.maximumf %11, %12 : vector<256x128xf32>
    %14 = arith.truncf %13 : vector<256x128xf32> to vector<256x128xbf16>
    %c0_9 = arith.constant 0 : index
    %c0_10 = arith.constant 0 : index
    %15 = vector.load %arg4[%c0_9, %c0_10] : memref<128x256xbf16, #tpu.memory_space<vmem>>, vector<128x256xbf16>
    %c0_11 = arith.constant 0 : index
    %c0_12 = arith.constant 0 : index
    %16 = vector.load %arg5[%c0_11, %c0_12] : memref<1x128xf32, #tpu.memory_space<vmem>>, vector<1x128xf32>
    %cst_13 = arith.constant dense<0.000000e+00> : vector<256x256xf32>
    %17 = tpu.matmul %14, %15, %cst_13 {dimension_numbers = #tpu.dot_dimension_numbers<[1], [0], [0], [1], [0, 0, 1, 1], [], []>} : vector<256x128xbf16>, vector<128x256xbf16>, vector<256x256xf32> -> vector<256x256xf32>
    %18 = vector.extract_strided_slice %17 {offsets = [0, 0], sizes = [256, 128], strides = [1, 1]} : vector<256x256xf32> to vector<256x128xf32>
    %19 = arith.truncf %18 : vector<256x128xf32> to vector<256x128xbf16>
    %cst_14 = arith.constant dense<0.000000e+00> : vector<256x128xf32>
    %20 = tpu.matmul %4, %19, %cst_14 {dimension_numbers = #tpu.dot_dimension_numbers<[1], [0], [0], [1], [0, 0, 1, 1], [], []>} : vector<256x256xbf16>, vector<256x128xbf16>, vector<256x128xf32> -> vector<256x128xf32>
    %21 = vector.extract_strided_slice %17 {offsets = [0, 128], sizes = [256, 128], strides = [1, 1]} : vector<256x256xf32> to vector<256x128xf32>
    %22 = arith.addf %20, %21 : vector<256x128xf32>
    %23 = vector.broadcast %16 : vector<1x128xf32> to vector<256x128xf32>
    %24 = arith.addf %22, %23 : vector<256x128xf32>
    %25 = arith.truncf %24 : vector<256x128xf32> to vector<256x128xbf16>
    %c0_15 = arith.constant 0 : index
    %c0_16 = arith.constant 0 : index
    %26 = vector.load %arg6[%c0_15, %c0_16] : memref<128x128xbf16, #tpu.memory_space<vmem>>, vector<128x128xbf16>
    %cst_17 = arith.constant dense<0.000000e+00> : vector<256x128xf32>
    %27 = tpu.matmul %25, %26, %cst_17 {dimension_numbers = #tpu.dot_dimension_numbers<[1], [0], [0], [1], [0, 0, 1, 1], [], []>} : vector<256x128xbf16>, vector<128x128xbf16>, vector<256x128xf32> -> vector<256x128xf32>
    %c0_18 = arith.constant 0 : index
    %c0_19 = arith.constant 0 : index
    %28 = vector.load %arg7[%c0_18, %c0_19] : memref<1x128xf32, #tpu.memory_space<vmem>>, vector<1x128xf32>
    %29 = vector.broadcast %28 : vector<1x128xf32> to vector<256x128xf32>
    %30 = arith.addf %27, %29 : vector<256x128xf32>
    %c0_20 = arith.constant 0 : index
    %c0_21 = arith.constant 0 : index
    %31 = vector.load %arg8[%c0_20, %c0_21] : memref<256x128xf32, #tpu.memory_space<vmem>>, vector<256x128xf32>
    tpu.vector_store %arg8[%c0_20, %c0_21], %30 {strides = array<i32>} : memref<256x128xf32, #tpu.memory_space<vmem>>, vector<256x128xf32>,
    return
  }
}

</mosaic_0001>

<llo_original>
// kernel: tpu_custom_call.1
$region0: #{tpu_custom_call.1}
  #allocation0 [shape = 'u32[]', space=smem, size = 0x4, offset = 0x4, fixed_abs, tag = 'smem constant byte address 0x4 - core index']
  #allocation1 [shape = 'u32[144,128]{1,0:T(1,128)}', space=vmem, size = 0x12000, scoped, tag = 'internal scratch']
  #allocation2 [shape = 'bf16[256,256]{1,0:T(16,128)(2,1)}', space=vmem, size = 0x20000, scoped, tag = 'scratch operand']
  #allocation3 [shape = 's32[1]{0}', space=sflag, size = 0x4, scoped, tag = 'scratch operand']
  #allocation13 [shape = 's32[]', space=sflag, size = 0x4, offset = 0, fixed_abs, tag = 'sflag constant byte address 0x0 - dummy sync flag']
  %s0 = inlined_call_operand.hbm [shape: bf16[256,256], index: 0, kind: input, shape index: {}]
  %s1 = inlined_call_operand.hbm [shape: bf16[256,128], index: 1, kind: input, shape index: {}]
  %s2 = inlined_call_operand.hbm [shape: bf16[128,256], index: 2, kind: input, shape index: {}]
  %s3 = inlined_call_operand.vmem [shape: f32[1,128], index: 3, kind: input, shape index: {}]
  %s4 = inlined_call_operand.hbm [shape: bf16[128,256], index: 4, kind: input, shape index: {}]
  %s5 = inlined_call_operand.vmem [shape: f32[1,128], index: 5, kind: input, shape index: {}]
  %s6 = inlined_call_operand.hbm [shape: bf16[128,128], index: 6, kind: input, shape index: {}]
  %s7 = inlined_call_operand.vmem [shape: f32[1,128], index: 7, kind: input, shape index: {}]
  %s8 = inlined_call_operand.hbm [shape: f32[256,128], index: 8, kind: output, shape index: {}]
  %s9 = sld [smem:[#allocation0]]
  $region54: #{tpu_custom_call.1} parent=0
    _
  %s11 = ssub.s32 1, %s9
  %s12 = scalar_select 0, %s11, %s9
  $region1: #{tpu_custom_call.1} parent=0
    #allocation4 [shape = 'u8[65536]{0}', space=vmem, size = 0x10000, scoped, tag = 'input window, operand 1, single buffered']
    #allocation5 [shape = 's32[1]{0}', space=sflag, size = 0x4, scoped, tag = 'scoped memory for tpu_custom_call.1']
    #allocation6 [shape = 's32[1]{0}', space=sflag, size = 0x4, scoped, tag = 'scoped memory for tpu_custom_call.1']
    #allocation7 [shape = 'u8[65536]{0}', space=vmem, size = 0x10000, scoped, tag = 'input window, operand 2, single buffered']
    #allocation8 [shape = 's32[1]{0}', space=sflag, size = 0x4, scoped, tag = 'scoped memory for tpu_custom_call.1']
    #allocation9 [shape = 'u8[65536]{0}', space=vmem, size = 0x10000, scoped, tag = 'input window, operand 4, single buffered']
    #allocation10 [shape = 'u8[32768]{0}', space=vmem, size = 0x8000, scoped, tag = 'input window, operand 6, single buffered']
    #allocation11 [shape = 's32[1]{0}', space=sflag, size = 0x4, scoped, tag = 'scoped memory for tpu_custom_call.1']
    #allocation12 [shape = 'u8[131072]{0}', space=vmem, size = 0x20000, scoped, tag = 'output window, operand 0, single buffered']
    #allocation14 [shape = 'u32[9]{0}', space=smem, size = 0x24, scoped, tag = 'DMA stride descriptor']
    %13 = vsyncpa [#allocation5], 0
    %14 = vsyncpa [#allocation8], 0
    %15 = vsyncpa [#allocation11], 0
    %16 = vsyncpa [#allocation6], 0
    // Predicated region
    $region2: #{tpu_custom_call.1} parent=1 // pred_check
      _
    $region3: #{tpu_custom_call.1} parent=1 // pred_check_branch
      %18 = sbr.rel (0) target = $region5
    $region4: #{tpu_custom_call.1} parent=1 // pred_region
      %s20 = ssub.s32 2048, 2048
      %21 = vsyncadd [#allocation5], %s20
      %s22 = sshll.u32 [#allocation4], 4
      %s23 = int_to_ptr.vmem [resolvable:$true] %s22
      %28 = dma.hbm_to_vmem [thread:$0]  %s1, 2048, %s23, [#allocation5], 64, 64, 4
    $region5: #{tpu_custom_call.1} parent=1 // pred_fallthru
      _
    // Predicated region
    $region6: #{tpu_custom_call.1} parent=1 // pred_check
      _
    $region7: #{tpu_custom_call.1} parent=1 // pred_check_branch
      %30 = sbr.rel (0) target = $region9
    $region8: #{tpu_custom_call.1} parent=1 // pred_region
      %s32 = ssub.s32 2048, 2048
      %33 = vsyncadd [#allocation8], %s32
      %s34 = sshll.u32 [#allocation7], 4
      %s35 = int_to_ptr.vmem [resolvable:$true] %s34
      %40 = dma.hbm_to_vmem [thread:$0]  %s2, 2048, %s35, [#allocation8], 128, 128, 8
    $region9: #{tpu_custom_call.1} parent=1 // pred_fallthru
      _
    // Predicated region
    $region10: #{tpu_custom_call.1} parent=1 // pred_check
      _
    $region11: #{tpu_custom_call.1} parent=1 // pred_check_branch
      %42 = sbr.rel (0) target = $region13
    $region12: #{tpu_custom_call.1} parent=1 // pred_region
      _
    $region13: #{tpu_custom_call.1} parent=1 // pred_fallthru
      _
    // Predicated region
    $region14: #{tpu_custom_call.1} parent=1 // pred_check
      _
    $region15: #{tpu_custom_call.1} parent=1 // pred_check_branch
      %44 = sbr.rel (0) target = $region17
    $region16: #{tpu_custom_call.1} parent=1 // pred_region
      %s46 = ssub.s32 2048, 2048
      %47 = vsyncadd [#allocation8], %s46
      %s48 = sshll.u32 [#allocation9], 4
      %s49 = int_to_ptr.vmem [resolvable:$true] %s48
      %54 = dma.hbm_to_vmem [thread:$0]  %s4, 2048, %s49, [#allocation8], 128, 128, 8
    $region17: #{tpu_custom_call.1} parent=1 // pred_fallthru
      _
    // Predicated region
    $region18: #{tpu_custom_call.1} parent=1 // pred_check
      _
    $region19: #{tpu_custom_call.1} parent=1 // pred_check_branch
      %56 = sbr.rel (0) target = $region21
    $region20: #{tpu_custom_call.1} parent=1 // pred_region
      _
    $region21: #{tpu_custom_call.1} parent=1 // pred_fallthru
      _
    // Predicated region
    $region22: #{tpu_custom_call.1} parent=1 // pred_check
      _
    $region23: #{tpu_custom_call.1} parent=1 // pred_check_branch
      %58 = sbr.rel (0) target = $region25
    $region24: #{tpu_custom_call.1} parent=1 // pred_region
      %s60 = ssub.s32 1024, 1024
      %61 = vsyncadd [#allocation11], %s60
      %s62 = sshll.u32 [#allocation10], 4
      %s63 = int_to_ptr.vmem [resolvable:$true] %s62
      %68 = dma.hbm_to_vmem [thread:$0]  %s6, 1024, %s63, [#allocation11], 64, 64, 4
    $region25: #{tpu_custom_call.1} parent=1 // pred_fallthru
      _
    // Predicated region
    $region26: #{tpu_custom_call.1} parent=1 // pred_check
      _
    $region27: #{tpu_custom_call.1} parent=1 // pred_check_branch
      %70 = sbr.rel (0) target = $region29
    $region28: #{tpu_custom_call.1} parent=1 // pred_region
      _
    $region29: #{tpu_custom_call.1} parent=1 // pred_fallthru
      _
    // Predicated region
    $region30: #{tpu_custom_call.1} parent=1 // pred_check
      _
    $region31: #{tpu_custom_call.1} parent=1 // pred_check_branch
      %72 = sbr.rel (0) target = $region33
    $region32: #{tpu_custom_call.1} parent=1 // pred_region
      %73 = dma.done [#allocation5], 2048
    $region33: #{tpu_custom_call.1} parent=1 // pred_fallthru
      _
    // Predicated region
    $region34: #{tpu_custom_call.1} parent=1 // pred_check
      _
    $region35: #{tpu_custom_call.1} parent=1 // pred_check_branch
      %75 = sbr.rel (0) target = $region37
    $region36: #{tpu_custom_call.1} parent=1 // pred_region
      %76 = dma.done [#allocation8], 2048
    $region37: #{tpu_custom_call.1} parent=1 // pred_fallthru
      _
    // Predicated region
    $region38: #{tpu_custom_call.1} parent=1 // pred_check
      _
    $region39: #{tpu_custom_call.1} parent=1 // pred_check_branch
      %78 = sbr.rel (0) target = $region41
    $region40: #{tpu_custom_call.1} parent=1 // pred_region
      %79 = dma.done [#allocation8], 2048
    $region41: #{tpu_custom_call.1} parent=1 // pred_fallthru
      _
    // Predicated region
    $region42: #{tpu_custom_call.1} parent=1 // pred_check
      _
    $region43: #{tpu_custom_call.1} parent=1 // pred_check_branch
      %81 = sbr.rel (0) target = $region45
    $region44: #{tpu_custom_call.1} parent=1 // pred_region
      %82 = dma.done [#allocation11], 1024
    $region45: #{tpu_custom_call.1} parent=1 // pred_fallthru
      _
    %s85 = sshll.u32 1, 14
    %s86 = sxor.u32 4294967295, %s85
    %s88 = sld [smem:[#allocation0]]
    %s89 = sadd.s32 2, %s88
    %s91 = sshll.u32 7, 26
    %s92 = sxor.u32 4294967295, %s91
    %s93 = sand.u32 0, %s92
    %s94 = sshll.u32 %s89, 26
    %s95 = sor.u32 %s93, %s94
    %s96 = sshll.u32 [#allocation2], 4
    %s97 = int_to_ptr.vmem [resolvable:$true] %s96
    %100 = sst [smem:[#allocation14]] 256
    %s101 = scalar_lea.smem [#allocation14], 1
    %102 = sst [smem:[%s101]] 256
    %s103 = scalar_lea.smem [#allocation14], 2
    %104 = sst [smem:[%s103]] 2
    %s105 = scalar_lea.smem [#allocation14], 3
    %106 = sst [smem:[%s105]] 64
    %s107 = scalar_lea.smem [#allocation14], 4
    %108 = sst [smem:[%s107]] 128
    %s109 = scalar_lea.smem [#allocation14], 5
    %110 = sst [smem:[%s109]] 2
    %s111 = scalar_lea.smem [#allocation14], 6
    %112 = sst [smem:[%s111]] 128
    %s113 = scalar_lea.smem [#allocation14], 7
    %114 = sst [smem:[%s113]] 64
    %s115 = scalar_lea.smem [#allocation14], 8
    %116 = sst [smem:[%s115]] 4
    %118 = dma.general %s0, 4096, %s97, [#allocation3], [#allocation13], [#allocation14], %s95, 0
    %v119 = vld [vmem:[#allocation4] sm:$0xf]
    %v120 = vld [vmem:[#allocation4 + $0x4] sm:$0xf]
    %v121 = vld [vmem:[#allocation4 + $0x8] sm:$0xf]
    %v122 = vld [vmem:[#allocation4 + $0xc] sm:$0xf]
    %v123 = vld [vmem:[#allocation4 + $0x10] sm:$0xf]
    %v124 = vld [vmem:[#allocation4 + $0x14] sm:$0xf]
    %v125 = vld [vmem:[#allocation4 + $0x18] sm:$0xf]
    %v126 = vld [vmem:[#allocation4 + $0x1c] sm:$0xf]
    %v127 = vld [vmem:[#allocation4 + $0x20] sm:$0xf]
    %v128 = vld [vmem:[#allocation4 + $0x24] sm:$0xf]
    %v129 = vld [vmem:[#allocation4 + $0x28] sm:$0xf]
    %v130 = vld [vmem:[#allocation4 + $0x2c] sm:$0xf]
    %v131 = vld [vmem:[#allocation4 + $0x30] sm:$0xf]
    %v132 = vld [vmem:[#allocation4 + $0x34] sm:$0xf]
    %v133 = vld [vmem:[#allocation4 + $0x38] sm:$0xf]
    %v134 = vld [vmem:[#allocation4 + $0x3c] sm:$0xf]
    %v135 = vld [vmem:[#allocation4 + $0x40] sm:$0xf]
    %v136 = vld [vmem:[#allocation4 + $0x44] sm:$0xf]
    %v137 = vld [vmem:[#allocation4 + $0x48] sm:$0xf]
    %v138 = vld [vmem:[#allocation4 + $0x4c] sm:$0xf]
    %v139 = vld [vmem:[#allocation4 + $0x50] sm:$0xf]
    %v140 = vld [vmem:[#allocation4 + $0x54] sm:$0xf]
    %v141 = vld [vmem:[#allocation4 + $0x58] sm:$0xf]
    %v142 = vld [vmem:[#allocation4 + $0x5c] sm:$0xf]
    %v143 = vld [vmem:[#allocation4 + $0x60] sm:$0xf]
    %v144 = vld [vmem:[#allocation4 + $0x64] sm:$0xf]
    %v145 = vld [vmem:[#allocation4 + $0x68] sm:$0xf]
    %v146 = vld [vmem:[#allocation4 + $0x6c] sm:$0xf]
    %v147 = vld [vmem:[#allocation4 + $0x70] sm:$0xf]
    %v148 = vld [vmem:[#allocation4 + $0x74] sm:$0xf]
    %v149 = vld [vmem:[#allocation4 + $0x78] sm:$0xf]
    %v150 = vld [vmem:[#allocation4 + $0x7c] sm:$0xf]
    %v151 = vld [vmem:[#allocation7] sm:$0xff]
    %v152 = vld [vmem:[#allocation7 + $0x8] sm:$0xff]
    %v153 = vld [vmem:[#allocation7 + $0x10] sm:$0xff]
    %v154 = vld [vmem:[#allocation7 + $0x18] sm:$0xff]
    %v155 = vld [vmem:[#allocation7 + $0x20] sm:$0xff]
    %v156 = vld [vmem:[#allocation7 + $0x28] sm:$0xff]
    %v157 = vld [vmem:[#allocation7 + $0x30] sm:$0xff]
    %v158 = vld [vmem:[#allocation7 + $0x38] sm:$0xff]
    %v159 = vld [vmem:[#allocation7 + $0x40] sm:$0xff]
    %v160 = vld [vmem:[#allocation7 + $0x48] sm:$0xff]
    %v161 = vld [vmem:[#allocation7 + $0x50] sm:$0xff]
    %v162 = vld [vmem:[#allocation7 + $0x58] sm:$0xff]
    %v163 = vld [vmem:[#allocation7 + $0x60] sm:$0xff]
    %v164 = vld [vmem:[#allocation7 + $0x68] sm:$0xff]
    %v165 = vld [vmem:[#allocation7 + $0x70] sm:$0xff]
    %v166 = vld [vmem:[#allocation7 + $0x78] sm:$0xff]
    %v167 = vld [vmem:[%s3] sm:$0x1]
    %v200 = vunpack.c.l.b16 %v119
    %v201 = vunpack.c.l.b16 %v120
    %v202 = vunpack.c.l.b16 %v121
    %v203 = vunpack.c.l.b16 %v122
    %v204 = vunpack.c.l.b16 %v123
    %v205 = vunpack.c.l.b16 %v124
    %v206 = vunpack.c.l.b16 %v125
    %v207 = vunpack.c.l.b16 %v126
    %v208 = vunpack.c.l.b16 %v127
    %v209 = vunpack.c.l.b16 %v128
    %v210 = vunpack.c.l.b16 %v129
    %v211 = vunpack.c.l.b16 %v130
    %v212 = vunpack.c.l.b16 %v131
    %v213 = vunpack.c.l.b16 %v132
    %v214 = vunpack.c.l.b16 %v133
    %v215 = vunpack.c.l.b16 %v134
    %v216 = vunpack.c.l.b16 %v135
    %v217 = vunpack.c.l.b16 %v136
    %v218 = vunpack.c.l.b16 %v137
    %v219 = vunpack.c.l.b16 %v138
    %v220 = vunpack.c.l.b16 %v139
    %v221 = vunpack.c.l.b16 %v140
    %v222 = vunpack.c.l.b16 %v141
    %v223 = vunpack.c.l.b16 %v142
    %v224 = vunpack.c.l.b16 %v143
    %v225 = vunpack.c.l.b16 %v144
    %v226 = vunpack.c.l.b16 %v145
    %v227 = vunpack.c.l.b16 %v146
    %v228 = vunpack.c.l.b16 %v147
    %v229 = vunpack.c.l.b16 %v148
    %v230 = vunpack.c.l.b16 %v149
    %v231 = vunpack.c.l.b16 %v150
    %v232 = vpack.c.b16 %v201, %v200
    %v233 = vpack.c.b16 %v203, %v202
    %v234 = vpack.c.b16 %v205, %v204
    %v235 = vpack.c.b16 %v207, %v206
    %v236 = vpack.c.b16 %v209, %v208
    %v237 = vpack.c.b16 %v211, %v210
    %v238 = vpack.c.b16 %v213, %v212
    %v239 = vpack.c.b16 %v215, %v214
    %v240 = vpack.c.b16 %v217, %v216
    %v241 = vpack.c.b16 %v219, %v218
    %v242 = vpack.c.b16 %v221, %v220
    %v243 = vpack.c.b16 %v223, %v222
    %v244 = vpack.c.b16 %v225, %v224
    %v245 = vpack.c.b16 %v227, %v226
    %v246 = vpack.c.b16 %v229, %v228
    %v247 = vpack.c.b16 %v231, %v230
    %v280 = vunpack.c.l.b16 %v151
    %v281 = vunpack.c.h.b16 %v151
    %v282 = vunpack.c.l.b16 %v152
    %v283 = vunpack.c.h.b16 %v152
    %v284 = vunpack.c.l.b16 %v153
    %v285 = vunpack.c.h.b16 %v153
    %v286 = vunpack.c.l.b16 %v154
    %v287 = vunpack.c.h.b16 %v154
    %v288 = vunpack.c.l.b16 %v155
    %v289 = vunpack.c.h.b16 %v155
    %v290 = vunpack.c.l.b16 %v156
    %v291 = vunpack.c.h.b16 %v156
    %v292 = vunpack.c.l.b16 %v157
    %v293 = vunpack.c.h.b16 %v157
    %v294 = vunpack.c.l.b16 %v158
    %v295 = vunpack.c.h.b16 %v158
    %v296 = vunpack.c.l.b16 %v159
    %v297 = vunpack.c.h.b16 %v159
    %v298 = vunpack.c.l.b16 %v160
    %v299 = vunpack.c.h.b16 %v160
    %v300 = vunpack.c.l.b16 %v161
    %v301 = vunpack.c.h.b16 %v161
    %v302 = vunpack.c.l.b16 %v162
    %v303 = vunpack.c.h.b16 %v162
    %v304 = vunpack.c.l.b16 %v163
    %v305 = vunpack.c.h.b16 %v163
    %v306 = vunpack.c.l.b16 %v164
    %v307 = vunpack.c.h.b16 %v164
    %v308 = vunpack.c.l.b16 %v165
    %v309 = vunpack.c.h.b16 %v165
    %v310 = vunpack.c.l.b16 %v166
    %v311 = vunpack.c.h.b16 %v166
    %v312 = vpack.c.b16 %v282, %v280
    %v313 = vpack.c.b16 %v283, %v281
    %v314 = vpack.c.b16 %v286, %v284
    %v315 = vpack.c.b16 %v287, %v285
    %v316 = vpack.c.b16 %v290, %v288
    %v317 = vpack.c.b16 %v291, %v289
    %v318 = vpack.c.b16 %v294, %v292
    %v319 = vpack.c.b16 %v295, %v293
    %v320 = vpack.c.b16 %v298, %v296
    %v321 = vpack.c.b16 %v299, %v297
    %v322 = vpack.c.b16 %v302, %v300
    %v323 = vpack.c.b16 %v303, %v301
    %v324 = vpack.c.b16 %v306, %v304
    %v325 = vpack.c.b16 %v307, %v305
    %v326 = vpack.c.b16 %v310, %v308
    %v327 = vpack.c.b16 %v311, %v309
    %344 = vmatprep.subr.bf16.mxu0 %v313
    %345 = vmatpush1.bf16.msra.mxu0 %v312
    %346 = vmatprep.subr.bf16.mxu0 %v315
    %347 = vmatpush1.bf16.msra.mxu0 %v314
    %348 = vmatprep.subr.bf16.mxu0 %v317
    %349 = vmatpush1.bf16.msra.mxu0 %v316
    %350 = vmatprep.subr.bf16.mxu0 %v319
    %351 = vmatpush1.bf16.msra.mxu0 %v318
    %352 = vmatprep.subr.bf16.mxu0 %v321
    %353 = vmatpush1.bf16.msra.mxu0 %v320
    %354 = vmatprep.subr.bf16.mxu0 %v323
    %355 = vmatpush1.bf16.msra.mxu0 %v322
    %356 = vmatprep.subr.bf16.mxu0 %v325
    %357 = vmatpush1.bf16.msra.mxu0 %v324
    %358 = vmatprep.subr.bf16.mxu0 %v327
    %359 = vmatpush1.bf16.msra.mxu0 %v326
    %360 = vmatprep.subr.bf16.mxu0 0
    %361 = vmatpush1.bf16.msra.mxu0 0
    %362 = vmatprep.subr.bf16.mxu0 0
    %363 = vmatpush1.bf16.msra.mxu0 0
    %364 = vmatprep.subr.bf16.mxu0 0
    %365 = vmatpush1.bf16.msra.mxu0 0
    %366 = vmatprep.subr.bf16.mxu0 0
    %367 = vmatpush1.bf16.msra.mxu0 0
    %368 = vmatprep.subr.bf16.mxu0 0
    %369 = vmatpush1.bf16.msra.mxu0 0
    %370 = vmatprep.subr.bf16.mxu0 0
    %371 = vmatpush1.bf16.msra.mxu0 0
    %372 = vmatprep.subr.bf16.mxu0 0
    %373 = vmatpush1.bf16.msra.mxu0 0
    %374 = vmatprep.subr.bf16.mxu0 0
    %375 = vmatpush1.bf16.msra.mxu0 0
    %376 = vmatprep.mubr.bf16.mxu0 0
    %377 = vmatmul.mubr.bf16.gmra.mrb[0].mxu0 %v232
    %v378 = vpop.f32.mrb[0].mxu0
    %v379 = vadd.f32 0.0, %v378
    %v380 = vpop.f32.mrb[0].mxu0
    %v381 = vadd.f32 0.0, %v380
    %v382 = vpop.f32.mrb[0].mxu0
    %v383 = vadd.f32 0.0, %v382
    %v384 = vpop.f32.mrb[0].mxu0
    %v385 = vadd.f32 0.0, %v384
    %386 = vmatprep.mubr.bf16.mxu0 0
    %387 = vmatmul.mubr.bf16.gmra.mrb[0].mxu0 %v233
    %v388 = vpop.f32.mrb[0].mxu0
    %v389 = vadd.f32 0.0, %v388
    %v390 = vpop.f32.mrb[0].mxu0
    %v391 = vadd.f32 0.0, %v390
    %v392 = vpop.f32.mrb[0].mxu0
    %v393 = vadd.f32 0.0, %v392
    %v394 = vpop.f32.mrb[0].mxu0
    %v395 = vadd.f32 0.0, %v394
    %396 = vmatprep.mubr.bf16.mxu0 0
    %397 = vmatmul.mubr.bf16.gmra.mrb[0].mxu0 %v234
    %v398 = vpop.f32.mrb[0].mxu0
    %v399 = vadd.f32 0.0, %v398
    %v400 = vpop.f32.mrb[0].mxu0
    %v401 = vadd.f32 0.0, %v400
    %v402 = vpop.f32.mrb[0].mxu0
    %v403 = vadd.f32 0.0, %v402
    %v404 = vpop.f32.mrb[0].mxu0
    %v405 = vadd.f32 0.0, %v404
    %406 = vmatprep.mubr.bf16.mxu0 0
    %407 = vmatmul.mubr.bf16.gmra.mrb[0].mxu0 %v235
    %v408 = vpop.f32.mrb[0].mxu0
    %v409 = vadd.f32 0.0, %v408
    %v410 = vpop.f32.mrb[0].mxu0
    %v411 = vadd.f32 0.0, %v410
    %v412 = vpop.f32.mrb[0].mxu0
    %v413 = vadd.f32 0.0, %v412
    %v414 = vpop.f32.mrb[0].mxu0
    %v415 = vadd.f32 0.0, %v414
    %416 = vmatprep.mubr.bf16.mxu0 0
    %417 = vmatmul.mubr.bf16.gmra.mrb[0].mxu0 %v236
    %v418 = vpop.f32.mrb[0].mxu0
    %v419 = vadd.f32 0.0, %v418
    %v420 = vpop.f32.mrb[0].mxu0
    %v421 = vadd.f32 0.0, %v420
    %v422 = vpop.f32.mrb[0].mxu0
    %v423 = vadd.f32 0.0, %v422
    %v424 = vpop.f32.mrb[0].mxu0
    %v425 = vadd.f32 0.0, %v424
    %426 = vmatprep.mubr.bf16.mxu0 0
    %427 = vmatmul.mubr.bf16.gmra.mrb[0].mxu0 %v237
    %v428 = vpop.f32.mrb[0].mxu0
    %v429 = vadd.f32 0.0, %v428
    %v430 = vpop.f32.mrb[0].mxu0
    %v431 = vadd.f32 0.0, %v430
    %v432 = vpop.f32.mrb[0].mxu0
    %v433 = vadd.f32 0.0, %v432
    %v434 = vpop.f32.mrb[0].mxu0
    %v435 = vadd.f32 0.0, %v434
    %436 = vmatprep.mubr.bf16.mxu0 0
    %437 = vmatmul.mubr.bf16.gmra.mrb[0].mxu0 %v238
    %v438 = vpop.f32.mrb[0].mxu0
    %v439 = vadd.f32 0.0, %v438
    %v440 = vpop.f32.mrb[0].mxu0
    %v441 = vadd.f32 0.0, %v440
    %v442 = vpop.f32.mrb[0].mxu0
    %v443 = vadd.f32 0.0, %v442
    %v444 = vpop.f32.mrb[0].mxu0
    %v445 = vadd.f32 0.0, %v444
    %446 = vmatprep.mubr.bf16.mxu0 0
    %447 = vmatmul.mubr.bf16.gmra.mrb[0].mxu0 %v239
    %v448 = vpop.f32.mrb[0].mxu0
    %v449 = vadd.f32 0.0, %v448
    %v450 = vpop.f32.mrb[0].mxu0
    %v451 = vadd.f32 0.0, %v450
    %v452 = vpop.f32.mrb[0].mxu0
    %v453 = vadd.f32 0.0, %v452
    %v454 = vpop.f32.mrb[0].mxu0
    %v455 = vadd.f32 0.0, %v454
    %456 = vmatprep.mubr.bf16.mxu0 0
    %457 = vmatmul.mubr.bf16.gmra.mrb[0].mxu0 %v240
    %v458 = vpop.f32.mrb[0].mxu0
    %v459 = vadd.f32 0.0, %v458
    %v460 = vpop.f32.mrb[0].mxu0
    %v461 = vadd.f32 0.0, %v460
    %v462 = vpop.f32.mrb[0].mxu0
    %v463 = vadd.f32 0.0, %v462
    %v464 = vpop.f32.mrb[0].mxu0
    %v465 = vadd.f32 0.0, %v464
    %466 = vmatprep.mubr.bf16.mxu0 0
    %467 = vmatmul.mubr.bf16.gmra.mrb[0].mxu0 %v241
    %v468 = vpop.f32.mrb[0].mxu0
    %v469 = vadd.f32 0.0, %v468
    %v470 = vpop.f32.mrb[0].mxu0
    %v471 = vadd.f32 0.0, %v470
    %v472 = vpop.f32.mrb[0].mxu0
    %v473 = vadd.f32 0.0, %v472
    %v474 = vpop.f32.mrb[0].mxu0
    %v475 = vadd.f32 0.0, %v474
    %476 = vmatprep.mubr.bf16.mxu0 0
    %477 = vmatmul.mubr.bf16.gmra.mrb[0].mxu0 %v242
    %v478 = vpop.f32.mrb[0].mxu0
    %v479 = vadd.f32 0.0, %v478
    %v480 = vpop.f32.mrb[0].mxu0
    %v481 = vadd.f32 0.0, %v480
    %v482 = vpop.f32.mrb[0].mxu0
    %v483 = vadd.f32 0.0, %v482
    %v484 = vpop.f32.mrb[0].mxu0
    %v485 = vadd.f32 0.0, %v484
    %486 = vmatprep.mubr.bf16.mxu0 0
    %487 = vmatmul.mubr.bf16.gmra.mrb[0].mxu0 %v243
    %v488 = vpop.f32.mrb[0].mxu0
    %v489 = vadd.f32 0.0, %v488
    %v490 = vpop.f32.mrb[0].mxu0
    %v491 = vadd.f32 0.0, %v490
    %v492 = vpop.f32.mrb[0].mxu0
    %v493 = vadd.f32 0.0, %v492
    %v494 = vpop.f32.mrb[0].mxu0
    %v495 = vadd.f32 0.0, %v494
    %496 = vmatprep.mubr.bf16.mxu0 0
    %497 = vmatmul.mubr.bf16.gmra.mrb[0].mxu0 %v244
    %v498 = vpop.f32.mrb[0].mxu0
    %v499 = vadd.f32 0.0, %v498
    %v500 = vpop.f32.mrb[0].mxu0
    %v501 = vadd.f32 0.0, %v500
    %v502 = vpop.f32.mrb[0].mxu0
    %v503 = vadd.f32 0.0, %v502
    %v504 = vpop.f32.mrb[0].mxu0
    %v505 = vadd.f32 0.0, %v504
    %506 = vmatprep.mubr.bf16.mxu0 0
    %507 = vmatmul.mubr.bf16.gmra.mrb[0].mxu0 %v245
    %v508 = vpop.f32.mrb[0].mxu0
    %v509 = vadd.f32 0.0, %v508
    %v510 = vpop.f32.mrb[0].mxu0
    %v511 = vadd.f32 0.0, %v510
    %v512 = vpop.f32.mrb[0].mxu0
    %v513 = vadd.f32 0.0, %v512
    %v514 = vpop.f32.mrb[0].mxu0
    %v515 = vadd.f32 0.0, %v514
    %516 = vmatprep.mubr.bf16.mxu0 0
    %517 = vmatmul.mubr.bf16.gmra.mrb[0].mxu0 %v246
    %v518 = vpop.f32.mrb[0].mxu0
    %v519 = vadd.f32 0.0, %v518
    %v520 = vpop.f32.mrb[0].mxu0
    %v521 = vadd.f32 0.0, %v520
    %v522 = vpop.f32.mrb[0].mxu0
    %v523 = vadd.f32 0.0, %v522
    %v524 = vpop.f32.mrb[0].mxu0
    %v525 = vadd.f32 0.0, %v524
    %526 = vmatprep.mubr.bf16.mxu0 0
    %527 = vmatmul.mubr.bf16.gmra.mrb[0].mxu0 %v247
    %v528 = vpop.f32.mrb[0].mxu0
    %v529 = vadd.f32 0.0, %v528
    %v530 = vpop.f32.mrb[0].mxu0
    %v531 = vadd.f32 0.0, %v530
    %v532 = vpop.f32.mrb[0].mxu0
    %v533 = vadd.f32 0.0, %v532
    %v534 = vpop.f32.mrb[0].mxu0
    %v535 = vadd.f32 0.0, %v534
    %536 = vdwg.mxu0
    %s537 = smul.u32 4, 32
    %s538 = smul.u32 %s537, 2
    %s539 = sshll.u32 %s538, 4
    %540 = dma.done [#allocation3], %s539
    %v541 = vld [vmem:[#allocation2] sm:$0xff]
    %v542 = vld [vmem:[#allocation2 + $0x8] sm:$0xff]
    %v543 = vld [vmem:[#allocation2 + $0x10] sm:$0xff]
    %v544 = vld [vmem:[#allocation2 + $0x18] sm:$0xff]
    %v545 = vld [vmem:[#allocation2 + $0x20] sm:$0xff]
    %v546 = vld [vmem:[#allocation2 + $0x28] sm:$0xff]
    %v547 = vld [vmem:[#allocation2 + $0x30] sm:$0xff]
    %v548 = vld [vmem:[#allocation2 + $0x38] sm:$0xff]
    %v549 = vld [vmem:[#allocation2 + $0x40] sm:$0xff]
    %v550 = vld [vmem:[#allocation2 + $0x48] sm:$0xff]
    %v551 = vld [vmem:[#allocation2 + $0x50] sm:$0xff]
    %v552 = vld [vmem:[#allocation2 + $0x58] sm:$0xff]
    %v553 = vld [vmem:[#allocation2 + $0x60] sm:$0xff]
    %v554 = vld [vmem:[#allocation2 + $0x68] sm:$0xff]
    %v555 = vld [vmem:[#allocation2 + $0x70] sm:$0xff]
    %v556 = vld [vmem:[#allocation2 + $0x78] sm:$0xff]
    %v557 = vld [vmem:[#allocation2 + $0x80] sm:$0xff]
    %v558 = vld [vmem:[#allocation2 + $0x88] sm:$0xff]
    %v559 = vld [vmem:[#allocation2 + $0x90] sm:$0xff]
    %v560 = vld [vmem:[#allocation2 + $0x98] sm:$0xff]
    %v561 = vld [vmem:[#allocation2 + $0xa0] sm:$0xff]
    %v562 = vld [vmem:[#allocation2 + $0xa8] sm:$0xff]
    %v563 = vld [vmem:[#allocation2 + $0xb0] sm:$0xff]
    %v564 = vld [vmem:[#allocation2 + $0xb8] sm:$0xff]
    %v565 = vld [vmem:[#allocation2 + $0xc0] sm:$0xff]
    %v566 = vld [vmem:[#allocation2 + $0xc8] sm:$0xff]
    %v567 = vld [vmem:[#allocation2 + $0xd0] sm:$0xff]
    %v568 = vld [vmem:[#allocation2 + $0xd8] sm:$0xff]
    %v569 = vld [vmem:[#allocation2 + $0xe0] sm:$0xff]
    %v570 = vld [vmem:[#allocation2 + $0xe8] sm:$0xff]
    %v571 = vld [vmem:[#allocation2 + $0xf0] sm:$0xff]
    %v572 = vld [vmem:[#allocation2 + $0xf8] sm:$0xff]
    %v573 = vpack.c.bf16 %v383, %v379
    %v574 = vpack.c.bf16 %v393, %v389
    %v575 = vpack.c.bf16 %v403, %v399
    %v576 = vpack.c.bf16 %v413, %v409
    %v577 = vpack.c.bf16 %v423, %v419
    %v578 = vpack.c.bf16 %v433, %v429
    %v579 = vpack.c.bf16 %v443, %v439
    %v580 = vpack.c.bf16 %v453, %v449
    %v581 = vpack.c.bf16 %v463, %v459
    %v582 = vpack.c.bf16 %v473, %v469
    %v583 = vpack.c.bf16 %v483, %v479
    %v584 = vpack.c.bf16 %v493, %v489
    %v585 = vpack.c.bf16 %v503, %v499
    %v586 = vpack.c.bf16 %v513, %v509
    %v587 = vpack.c.bf16 %v523, %v519
    %v588 = vpack.c.bf16 %v533, %v529
    %589 = vmatprep.subr.bf16.mxu0 0
    %590 = vmatpush1.bf16.msra.mxu0 %v573
    %591 = vmatprep.subr.bf16.mxu0 0
    %592 = vmatpush1.bf16.msra.mxu0 %v574
    %593 = vmatprep.subr.bf16.mxu0 0
    %594 = vmatpush1.bf16.msra.mxu0 %v575
    %595 = vmatprep.subr.bf16.mxu0 0
    %596 = vmatpush1.bf16.msra.mxu0 %v576
    %597 = vmatprep.subr.bf16.mxu0 0
    %598 = vmatpush1.bf16.msra.mxu0 %v577
    %599 = vmatprep.subr.bf16.mxu0 0
    %600 = vmatpush1.bf16.msra.mxu0 %v578
    %601 = vmatprep.subr.bf16.mxu0 0
    %602 = vmatpush1.bf16.msra.mxu0 %v579
    %603 = vmatprep.subr.bf16.mxu0 0
    %604 = vmatpush1.bf16.msra.mxu0 %v580
    %605 = vmatprep.subr.bf16.mxu0 0
    %606 = vmatpush1.bf16.msra.mxu0 %v581
    %607 = vmatprep.subr.bf16.mxu0 0
    %608 = vmatpush1.bf16.msra.mxu0 %v582
    %609 = vmatprep.subr.bf16.mxu0 0
    %610 = vmatpush1.bf16.msra.mxu0 %v583
    %611 = vmatprep.subr.bf16.mxu0 0
    %612 = vmatpush1.bf16.msra.mxu0 %v584
    %613 = vmatprep.subr.bf16.mxu0 0
    %614 = vmatpush1.bf16.msra.mxu0 %v585
    %615 = vmatprep.subr.bf16.mxu0 0
    %616 = vmatpush1.bf16.msra.mxu0 %v586
    %617 = vmatprep.subr.bf16.mxu0 0
    %618 = vmatpush1.bf16.msra.mxu0 %v587
    %619 = vmatprep.subr.bf16.mxu0 0
    %620 = vmatpush1.bf16.msra.mxu0 %v588
    %621 = vmatprep.mubr.bf16.mxu0 %v542
    %622 = vmatmul.mubr.bf16.gmra.mrb[0].mxu0 %v541
    %v623 = vpop.f32.mrb[0].mxu0
    %v624 = vadd.f32 %v381, %v623
    %v625 = vpop.f32.mrb[0].mxu0
    %v626 = vpop.f32.mrb[0].mxu0
    %v627 = vadd.f32 %v385, %v626
    %v628 = vpop.f32.mrb[0].mxu0
    %629 = vmatprep.mubr.bf16.mxu0 %v544
    %630 = vmatmul.mubr.bf16.gmra.mrb[0].mxu0 %v543
    %v631 = vpop.f32.mrb[0].mxu0
    %v632 = vadd.f32 %v391, %v631
    %v633 = vpop.f32.mrb[0].mxu0
    %v634 = vpop.f32.mrb[0].mxu0
    %v635 = vadd.f32 %v395, %v634
    %v636 = vpop.f32.mrb[0].mxu0
    %637 = vmatprep.mubr.bf16.mxu0 %v546
    %638 = vmatmul.mubr.bf16.gmra.mrb[0].mxu0 %v545
    %v639 = vpop.f32.mrb[0].mxu0
    %v640 = vadd.f32 %v401, %v639
    %v641 = vpop.f32.mrb[0].mxu0
    %v642 = vpop.f32.mrb[0].mxu0
    %v643 = vadd.f32 %v405, %v642
    %v644 = vpop.f32.mrb[0].mxu0
    %645 = vmatprep.mubr.bf16.mxu0 %v548
    %646 = vmatmul.mubr.bf16.gmra.mrb[0].mxu0 %v547
    %v647 = vpop.f32.mrb[0].mxu0
    %v648 = vadd.f32 %v411, %v647
    %v649 = vpop.f32.mrb[0].mxu0
    %v650 = vpop.f32.mrb[0].mxu0
    %v651 = vadd.f32 %v415, %v650
    %v652 = vpop.f32.mrb[0].mxu0
    %653 = vmatprep.mubr.bf16.mxu0 %v550
    %654 = vmatmul.mubr.bf16.gmra.mrb[0].mxu0 %v549
    %v655 = vpop.f32.mrb[0].mxu0
    %v656 = vadd.f32 %v421, %v655
    %v657 = vpop.f32.mrb[0].mxu0
    %v658 = vpop.f32.mrb[0].mxu0
    %v659 = vadd.f32 %v425, %v658
    %v660 = vpop.f32.mrb[0].mxu0
    %661 = vmatprep.mubr.bf16.mxu0 %v552
    %662 = vmatmul.mubr.bf16.gmra.mrb[0].mxu0 %v551
    %v663 = vpop.f32.mrb[0].mxu0
    %v664 = vadd.f32 %v431, %v663
    %v665 = vpop.f32.mrb[0].mxu0
    %v666 = vpop.f32.mrb[0].mxu0
    %v667 = vadd.f32 %v435, %v666
    %v668 = vpop.f32.mrb[0].mxu0
    %669 = vmatprep.mubr.bf16.mxu0 %v554
    %670 = vmatmul.mubr.bf16.gmra.mrb[0].mxu0 %v553
    %v671 = vpop.f32.mrb[0].mxu0
    %v672 = vadd.f32 %v441, %v671
    %v673 = vpop.f32.mrb[0].mxu0
    %v674 = vpop.f32.mrb[0].mxu0
    %v675 = vadd.f32 %v445, %v674
    %v676 = vpop.f32.mrb[0].mxu0
    %677 = vmatprep.mubr.bf16.mxu0 %v556
    %678 = vmatmul.mubr.bf16.gmra.mrb[0].mxu0 %v555
    %v679 = vpop.f32.mrb[0].mxu0
    %v680 = vadd.f32 %v451, %v679
    %v681 = vpop.f32.mrb[0].mxu0
    %v682 = vpop.f32.mrb[0].mxu0
    %v683 = vadd.f32 %v455, %v682
    %v684 = vpop.f32.mrb[0].mxu0
    %685 = vmatprep.mubr.bf16.mxu0 %v558
    %686 = vmatmul.mubr.bf16.gmra.mrb[0].mxu0 %v557
    %v687 = vpop.f32.mrb[0].mxu0
    %v688 = vadd.f32 %v461, %v687
    %v689 = vpop.f32.mrb[0].mxu0
    %v690 = vpop.f32.mrb[0].mxu0
    %v691 = vadd.f32 %v465, %v690
    %v692 = vpop.f32.mrb[0].mxu0
    %693 = vmatprep.mubr.bf16.mxu0 %v560
    %694 = vmatmul.mubr.bf16.gmra.mrb[0].mxu0 %v559
    %v695 = vpop.f32.mrb[0].mxu0
    %v696 = vadd.f32 %v471, %v695
    %v697 = vpop.f32.mrb[0].mxu0
    %v698 = vpop.f32.mrb[0].mxu0
    %v699 = vadd.f32 %v475, %v698
    %v700 = vpop.f32.mrb[0].mxu0
    %701 = vmatprep.mubr.bf16.mxu0 %v562
    %702 = vmatmul.mubr.bf16.gmra.mrb[0].mxu0 %v561
    %v703 = vpop.f32.mrb[0].mxu0
    %v704 = vadd.f32 %v481, %v703
    %v705 = vpop.f32.mrb[0].mxu0
    %v706 = vpop.f32.mrb[0].mxu0
    %v707 = vadd.f32 %v485, %v706
    %v708 = vpop.f32.mrb[0].mxu0
    %709 = vmatprep.mubr.bf16.mxu0 %v564
    %710 = vmatmul.mubr.bf16.gmra.mrb[0].mxu0 %v563
    %v711 = vpop.f32.mrb[0].mxu0
    %v712 = vadd.f32 %v491, %v711
    %v713 = vpop.f32.mrb[0].mxu0
    %v714 = vpop.f32.mrb[0].mxu0
    %v715 = vadd.f32 %v495, %v714
    %v716 = vpop.f32.mrb[0].mxu0
    %717 = vmatprep.mubr.bf16.mxu0 %v566
    %718 = vmatmul.mubr.bf16.gmra.mrb[0].mxu0 %v565
    %v719 = vpop.f32.mrb[0].mxu0
    %v720 = vadd.f32 %v501, %v719
    %v721 = vpop.f32.mrb[0].mxu0
    %v722 = vpop.f32.mrb[0].mxu0
    %v723 = vadd.f32 %v505, %v722
    %v724 = vpop.f32.mrb[0].mxu0
    %725 = vmatprep.mubr.bf16.mxu0 %v568
    %726 = vmatmul.mubr.bf16.gmra.mrb[0].mxu0 %v567
    %v727 = vpop.f32.mrb[0].mxu0
    %v728 = vadd.f32 %v511, %v727
    %v729 = vpop.f32.mrb[0].mxu0
    %v730 = vpop.f32.mrb[0].mxu0
    %v731 = vadd.f32 %v515, %v730
    %v732 = vpop.f32.mrb[0].mxu0
    %733 = vmatprep.mubr.bf16.mxu0 %v570
    %734 = vmatmul.mubr.bf16.gmra.mrb[0].mxu0 %v569
    %v735 = vpop.f32.mrb[0].mxu0
    %v736 = vadd.f32 %v521, %v735
    %v737 = vpop.f32.mrb[0].mxu0
    %v738 = vpop.f32.mrb[0].mxu0
    %v739 = vadd.f32 %v525, %v738
    %v740 = vpop.f32.mrb[0].mxu0
    %741 = vmatprep.mubr.bf16.mxu0 %v572
    %742 = vmatmul.mubr.bf16.gmra.mrb[0].mxu0 %v571
    %v743 = vpop.f32.mrb[0].mxu0
    %v744 = vadd.f32 %v531, %v743
    %v745 = vpop.f32.mrb[0].mxu0
    %v746 = vpop.f32.mrb[0].mxu0
    %v747 = vadd.f32 %v535, %v746
    %v748 = vpop.f32.mrb[0].mxu0
    %749 = vdwg.mxu0
    %v751 = vlaneseq
    %v752 = vshrl.u32 %v751, 7
    %v753 = vsub.s32 0, %v752
    %v754 = vrot.slane %v167, %v753
    %v756 = vadd.f32 %v624, %v754
    %v757 = vadd.f32 %v627, %v754
    %v758 = vadd.f32 %v632, %v754
    %v759 = vadd.f32 %v635, %v754
    %v760 = vadd.f32 %v640, %v754
    %v761 = vadd.f32 %v643, %v754
    %v762 = vadd.f32 %v648, %v754
    %v763 = vadd.f32 %v651, %v754
    %v764 = vadd.f32 %v656, %v754
    %v765 = vadd.f32 %v659, %v754
    %v766 = vadd.f32 %v664, %v754
    %v767 = vadd.f32 %v667, %v754
    %v768 = vadd.f32 %v672, %v754
    %v769 = vadd.f32 %v675, %v754
    %v770 = vadd.f32 %v680, %v754
    %v771 = vadd.f32 %v683, %v754
    %v772 = vadd.f32 %v688, %v754
    %v773 = vadd.f32 %v691, %v754
    %v774 = vadd.f32 %v696, %v754
    %v775 = vadd.f32 %v699, %v754
    %v776 = vadd.f32 %v704, %v754
    %v777 = vadd.f32 %v707, %v754
    %v778 = vadd.f32 %v712, %v754
    %v779 = vadd.f32 %v715, %v754
    %v780 = vadd.f32 %v720, %v754
    %v781 = vadd.f32 %v723, %v754
    %v782 = vadd.f32 %v728, %v754
    %v783 = vadd.f32 %v731, %v754
    %v784 = vadd.f32 %v736, %v754
    %v785 = vadd.f32 %v739, %v754
    %v786 = vadd.f32 %v744, %v754
    %v787 = vadd.f32 %v747, %v754
    %v788 = vmax.f32 %v756, 0.0
    %v789 = vmax.f32 %v757, 0.0
    %v790 = vmax.f32 %v758, 0.0
    %v791 = vmax.f32 %v759, 0.0
    %v792 = vmax.f32 %v760, 0.0
    %v793 = vmax.f32 %v761, 0.0
    %v794 = vmax.f32 %v762, 0.0
    %v795 = vmax.f32 %v763, 0.0
    %v796 = vmax.f32 %v764, 0.0
    %v797 = vmax.f32 %v765, 0.0
    %v798 = vmax.f32 %v766, 0.0
    %v799 = vmax.f32 %v767, 0.0
    %v800 = vmax.f32 %v768, 0.0
    %v801 = vmax.f32 %v769, 0.0
    %v802 = vmax.f32 %v770, 0.0
    %v803 = vmax.f32 %v771, 0.0
    %v804 = vmax.f32 %v772, 0.0
    %v805 = vmax.f32 %v773, 0.0
    %v806 = vmax.f32 %v774, 0.0
    %v807 = vmax.f32 %v775, 0.0
    %v808 = vmax.f32 %v776, 0.0
    %v809 = vmax.f32 %v777, 0.0
    %v810 = vmax.f32 %v778, 0.0
    %v811 = vmax.f32 %v779, 0.0
    %v812 = vmax.f32 %v780, 0.0
    %v813 = vmax.f32 %v781, 0.0
    %v814 = vmax.f32 %v782, 0.0
    %v815 = vmax.f32 %v783, 0.0
    %v816 = vmax.f32 %v784, 0.0
    %v817 = vmax.f32 %v785, 0.0
    %v818 = vmax.f32 %v786, 0.0
    %v819 = vmax.f32 %v787, 0.0
    %v820 = vpack.c.bf16 %v789, %v788
    %v821 = vpack.c.bf16 %v791, %v790
    %v822 = vpack.c.bf16 %v793, %v792
    %v823 = vpack.c.bf16 %v795, %v794
    %v824 = vpack.c.bf16 %v797, %v796
    %v825 = vpack.c.bf16 %v799, %v798
    %v826 = vpack.c.bf16 %v801, %v800
    %v827 = vpack.c.bf16 %v803, %v802
    %v828 = vpack.c.bf16 %v805, %v804
    %v829 = vpack.c.bf16 %v807, %v806
    %v830 = vpack.c.bf16 %v809, %v808
    %v831 = vpack.c.bf16 %v811, %v810
    %v832 = vpack.c.bf16 %v813, %v812
    %v833 = vpack.c.bf16 %v815, %v814
    %v834 = vpack.c.bf16 %v817, %v816
    %v835 = vpack.c.bf16 %v819, %v818
    %v836 = vld [vmem:[#allocation9] sm:$0xff]
    %v837 = vld [vmem:[#allocation9 + $0x8] sm:$0xff]
    %v838 = vld [vmem:[#allocation9 + $0x10] sm:$0xff]
    %v839 = vld [vmem:[#allocation9 + $0x18] sm:$0xff]
    %v840 = vld [vmem:[#allocation9 + $0x20] sm:$0xff]
    %v841 = vld [vmem:[#allocation9 + $0x28] sm:$0xff]
    %v842 = vld [vmem:[#allocation9 + $0x30] sm:$0xff]
    %v843 = vld [vmem:[#allocation9 + $0x38] sm:$0xff]
    %v844 = vld [vmem:[#allocation9 + $0x40] sm:$0xff]
    %v845 = vld [vmem:[#allocation9 + $0x48] sm:$0xff]
    %v846 = vld [vmem:[#allocation9 + $0x50] sm:$0xff]
    %v847 = vld [vmem:[#allocation9 + $0x58] sm:$0xff]
    %v848 = vld [vmem:[#allocation9 + $0x60] sm:$0xff]
    %v849 = vld [vmem:[#allocation9 + $0x68] sm:$0xff]
    %v850 = vld [vmem:[#allocation9 + $0x70] sm:$0xff]
    %v851 = vld [vmem:[#allocation9 + $0x78] sm:$0xff]
    %v852 = vld [vmem:[%s5] sm:$0x1]
    %v869 = vunpack.c.l.b16 %v836
    %v870 = vunpack.c.h.b16 %v836
    %v871 = vunpack.c.l.b16 %v837
    %v872 = vunpack.c.h.b16 %v837
    %v873 = vunpack.c.l.b16 %v838
    %v874 = vunpack.c.h.b16 %v838
    %v875 = vunpack.c.l.b16 %v839
    %v876 = vunpack.c.h.b16 %v839
    %v877 = vunpack.c.l.b16 %v840
    %v878 = vunpack.c.h.b16 %v840
    %v879 = vunpack.c.l.b16 %v841
    %v880 = vunpack.c.h.b16 %v841
    %v881 = vunpack.c.l.b16 %v842
    %v882 = vunpack.c.h.b16 %v842
    %v883 = vunpack.c.l.b16 %v843
    %v884 = vunpack.c.h.b16 %v843
    %v885 = vunpack.c.l.b16 %v844
    %v886 = vunpack.c.h.b16 %v844
    %v887 = vunpack.c.l.b16 %v845
    %v888 = vunpack.c.h.b16 %v845
    %v889 = vunpack.c.l.b16 %v846
    %v890 = vunpack.c.h.b16 %v846
    %v891 = vunpack.c.l.b16 %v847
    %v892 = vunpack.c.h.b16 %v847
    %v893 = vunpack.c.l.b16 %v848
    %v894 = vunpack.c.h.b16 %v848
    %v895 = vunpack.c.l.b16 %v849
    %v896 = vunpack.c.h.b16 %v849
    %v897 = vunpack.c.l.b16 %v850
    %v898 = vunpack.c.h.b16 %v850
    %v899 = vunpack.c.l.b16 %v851
    %v900 = vunpack.c.h.b16 %v851
    %v901 = vpack.c.b16 %v871, %v869
    %v902 = vpack.c.b16 %v872, %v870
    %v903 = vpack.c.b16 %v875, %v873
    %v904 = vpack.c.b16 %v876, %v874
    %v905 = vpack.c.b16 %v879, %v877
    %v906 = vpack.c.b16 %v880, %v878
    %v907 = vpack.c.b16 %v883, %v881
    %v908 = vpack.c.b16 %v884, %v882
    %v909 = vpack.c.b16 %v887, %v885
    %v910 = vpack.c.b16 %v888, %v886
    %v911 = vpack.c.b16 %v891, %v889
    %v912 = vpack.c.b16 %v892, %v890
    %v913 = vpack.c.b16 %v895, %v893
    %v914 = vpack.c.b16 %v896, %v894
    %v915 = vpack.c.b16 %v899, %v897
    %v916 = vpack.c.b16 %v900, %v898
    %933 = vmatprep.subr.bf16.mxu0 %v902
    %934 = vmatpush1.bf16.msra.mxu0 %v901
    %935 = vmatprep.subr.bf16.mxu0 %v904
    %936 = vmatpush1.bf16.msra.mxu0 %v903
    %937 = vmatprep.subr.bf16.mxu0 %v906
    %938 = vmatpush1.bf16.msra.mxu0 %v905
    %939 = vmatprep.subr.bf16.mxu0 %v908
    %940 = vmatpush1.bf16.msra.mxu0 %v907
    %941 = vmatprep.subr.bf16.mxu0 %v910
    %942 = vmatpush1.bf16.msra.mxu0 %v909
    %943 = vmatprep.subr.bf16.mxu0 %v912
    %944 = vmatpush1.bf16.msra.mxu0 %v911
    %945 = vmatprep.subr.bf16.mxu0 %v914
    %946 = vmatpush1.bf16.msra.mxu0 %v913
    %947 = vmatprep.subr.bf16.mxu0 %v916
    %948 = vmatpush1.bf16.msra.mxu0 %v915
    %949 = vmatprep.subr.bf16.mxu0 0
    %950 = vmatpush1.bf16.msra.mxu0 0
    %951 = vmatprep.subr.bf16.mxu0 0
    %952 = vmatpush1.bf16.msra.mxu0 0
    %953 = vmatprep.subr.bf16.mxu0 0
    %954 = vmatpush1.bf16.msra.mxu0 0
    %955 = vmatprep.subr.bf16.mxu0 0
    %956 = vmatpush1.bf16.msra.mxu0 0
    %957 = vmatprep.subr.bf16.mxu0 0
    %958 = vmatpush1.bf16.msra.mxu0 0
    %959 = vmatprep.subr.bf16.mxu0 0
    %960 = vmatpush1.bf16.msra.mxu0 0
    %961 = vmatprep.subr.bf16.mxu0 0
    %962 = vmatpush1.bf16.msra.mxu0 0
    %963 = vmatprep.subr.bf16.mxu0 0
    %964 = vmatpush1.bf16.msra.mxu0 0
    %965 = vmatprep.mubr.bf16.mxu0 0
    %966 = vmatmul.mubr.bf16.gmra.mrb[0].mxu0 %v820
    %v967 = vpop.f32.mrb[0].mxu0
    %v968 = vadd.f32 0.0, %v967
    %v969 = vpop.f32.mrb[0].mxu0
    %v970 = vadd.f32 0.0, %v969
    %v971 = vpop.f32.mrb[0].mxu0
    %v972 = vadd.f32 0.0, %v971
    %v973 = vpop.f32.mrb[0].mxu0
    %v974 = vadd.f32 0.0, %v973
    %975 = vmatprep.mubr.bf16.mxu0 0
    %976 = vmatmul.mubr.bf16.gmra.mrb[0].mxu0 %v821
    %v977 = vpop.f32.mrb[0].mxu0
    %v978 = vadd.f32 0.0, %v977
    %v979 = vpop.f32.mrb[0].mxu0
    %v980 = vadd.f32 0.0, %v979
    %v981 = vpop.f32.mrb[0].mxu0
    %v982 = vadd.f32 0.0, %v981
    %v983 = vpop.f32.mrb[0].mxu0
    %v984 = vadd.f32 0.0, %v983
    %985 = vmatprep.mubr.bf16.mxu0 0
    %986 = vmatmul.mubr.bf16.gmra.mrb[0].mxu0 %v822
    %v987 = vpop.f32.mrb[0].mxu0
    %v988 = vadd.f32 0.0, %v987
    %v989 = vpop.f32.mrb[0].mxu0
    %v990 = vadd.f32 0.0, %v989
    %v991 = vpop.f32.mrb[0].mxu0
    %v992 = vadd.f32 0.0, %v991
    %v993 = vpop.f32.mrb[0].mxu0
    %v994 = vadd.f32 0.0, %v993
    %995 = vmatprep.mubr.bf16.mxu0 0
    %996 = vmatmul.mubr.bf16.gmra.mrb[0].mxu0 %v823
    %v997 = vpop.f32.mrb[0].mxu0
    %v998 = vadd.f32 0.0, %v997
    %v999 = vpop.f32.mrb[0].mxu0
    %v1000 = vadd.f32 0.0, %v999
    %v1001 = vpop.f32.mrb[0].mxu0
    %v1002 = vadd.f32 0.0, %v1001
    %v1003 = vpop.f32.mrb[0].mxu0
    %v1004 = vadd.f32 0.0, %v1003
    %1005 = vmatprep.mubr.bf16.mxu0 0
    %1006 = vmatmul.mubr.bf16.gmra.mrb[0].mxu0 %v824
    %v1007 = vpop.f32.mrb[0].mxu0
    %v1008 = vadd.f32 0.0, %v1007
    %v1009 = vpop.f32.mrb[0].mxu0
    %v1010 = vadd.f32 0.0, %v1009
    %v1011 = vpop.f32.mrb[0].mxu0
    %v1012 = vadd.f32 0.0, %v1011
    %v1013 = vpop.f32.mrb[0].mxu0
    %v1014 = vadd.f32 0.0, %v1013
    %1015 = vmatprep.mubr.bf16.mxu0 0
    %1016 = vmatmul.mubr.bf16.gmra.mrb[0].mxu0 %v825
    %v1017 = vpop.f32.mrb[0].mxu0
    %v1018 = vadd.f32 0.0, %v1017
    %v1019 = vpop.f32.mrb[0].mxu0
    %v1020 = vadd.f32 0.0, %v1019
    %v1021 = vpop.f32.mrb[0].mxu0
    %v1022 = vadd.f32 0.0, %v1021
    %v1023 = vpop.f32.mrb[0].mxu0
    %v1024 = vadd.f32 0.0, %v1023
    %1025 = vmatprep.mubr.bf16.mxu0 0
    %1026 = vmatmul.mubr.bf16.gmra.mrb[0].mxu0 %v826
    %v1027 = vpop.f32.mrb[0].mxu0
    %v1028 = vadd.f32 0.0, %v1027
    %v1029 = vpop.f32.mrb[0].mxu0
    %v1030 = vadd.f32 0.0, %v1029
    %v1031 = vpop.f32.mrb[0].mxu0
    %v1032 = vadd.f32 0.0, %v1031
    %v1033 = vpop.f32.mrb[0].mxu0
    %v1034 = vadd.f32 0.0, %v1033
    %1035 = vmatprep.mubr.bf16.mxu0 0
    %1036 = vmatmul.mubr.bf16.gmra.mrb[0].mxu0 %v827
    %v1037 = vpop.f32.mrb[0].mxu0
    %v1038 = vadd.f32 0.0, %v1037
    %v1039 = vpop.f32.mrb[0].mxu0
    %v1040 = vadd.f32 0.0, %v1039
    %v1041 = vpop.f32.mrb[0].mxu0
    %v1042 = vadd.f32 0.0, %v1041
    %v1043 = vpop.f32.mrb[0].mxu0
    %v1044 = vadd.f32 0.0, %v1043
    %1045 = vmatprep.mubr.bf16.mxu0 0
    %1046 = vmatmul.mubr.bf16.gmra.mrb[0].mxu0 %v828
    %v1047 = vpop.f32.mrb[0].mxu0
    %v1048 = vadd.f32 0.0, %v1047
    %v1049 = vpop.f32.mrb[0].mxu0
    %v1050 = vadd.f32 0.0, %v1049
    %v1051 = vpop.f32.mrb[0].mxu0
    %v1052 = vadd.f32 0.0, %v1051
    %v1053 = vpop.f32.mrb[0].mxu0
    %v1054 = vadd.f32 0.0, %v1053
    %1055 = vmatprep.mubr.bf16.mxu0 0
    %1056 = vmatmul.mubr.bf16.gmra.mrb[0].mxu0 %v829
    %v1057 = vpop.f32.mrb[0].mxu0
    %v1058 = vadd.f32 0.0, %v1057
    %v1059 = vpop.f32.mrb[0].mxu0
    %v1060 = vadd.f32 0.0, %v1059
    %v1061 = vpop.f32.mrb[0].mxu0
    %v1062 = vadd.f32 0.0, %v1061
    %v1063 = vpop.f32.mrb[0].mxu0
    %v1064 = vadd.f32 0.0, %v1063
    %1065 = vmatprep.mubr.bf16.mxu0 0
    %1066 = vmatmul.mubr.bf16.gmra.mrb[0].mxu0 %v830
    %v1067 = vpop.f32.mrb[0].mxu0
    %v1068 = vadd.f32 0.0, %v1067
    %v1069 = vpop.f32.mrb[0].mxu0
    %v1070 = vadd.f32 0.0, %v1069
    %v1071 = vpop.f32.mrb[0].mxu0
    %v1072 = vadd.f32 0.0, %v1071
    %v1073 = vpop.f32.mrb[0].mxu0
    %v1074 = vadd.f32 0.0, %v1073
    %1075 = vmatprep.mubr.bf16.mxu0 0
    %1076 = vmatmul.mubr.bf16.gmra.mrb[0].mxu0 %v831
    %v1077 = vpop.f32.mrb[0].mxu0
    %v1078 = vadd.f32 0.0, %v1077
    %v1079 = vpop.f32.mrb[0].mxu0
    %v1080 = vadd.f32 0.0, %v1079
    %v1081 = vpop.f32.mrb[0].mxu0
    %v1082 = vadd.f32 0.0, %v1081
    %v1083 = vpop.f32.mrb[0].mxu0
    %v1084 = vadd.f32 0.0, %v1083
    %1085 = vmatprep.mubr.bf16.mxu0 0
    %1086 = vmatmul.mubr.bf16.gmra.mrb[0].mxu0 %v832
    %v1087 = vpop.f32.mrb[0].mxu0
    %v1088 = vadd.f32 0.0, %v1087
    %v1089 = vpop.f32.mrb[0].mxu0
    %v1090 = vadd.f32 0.0, %v1089
    %v1091 = vpop.f32.mrb[0].mxu0
    %v1092 = vadd.f32 0.0, %v1091
    %v1093 = vpop.f32.mrb[0].mxu0
    %v1094 = vadd.f32 0.0, %v1093
    %1095 = vmatprep.mubr.bf16.mxu0 0
    %1096 = vmatmul.mubr.bf16.gmra.mrb[0].mxu0 %v833
    %v1097 = vpop.f32.mrb[0].mxu0
    %v1098 = vadd.f32 0.0, %v1097
    %v1099 = vpop.f32.mrb[0].mxu0
    %v1100 = vadd.f32 0.0, %v1099
    %v1101 = vpop.f32.mrb[0].mxu0
    %v1102 = vadd.f32 0.0, %v1101
    %v1103 = vpop.f32.mrb[0].mxu0
    %v1104 = vadd.f32 0.0, %v1103
    %1105 = vmatprep.mubr.bf16.mxu0 0
    %1106 = vmatmul.mubr.bf16.gmra.mrb[0].mxu0 %v834
    %v1107 = vpop.f32.mrb[0].mxu0
    %v1108 = vadd.f32 0.0, %v1107
    %v1109 = vpop.f32.mrb[0].mxu0
    %v1110 = vadd.f32 0.0, %v1109
    %v1111 = vpop.f32.mrb[0].mxu0
    %v1112 = vadd.f32 0.0, %v1111
    %v1113 = vpop.f32.mrb[0].mxu0
    %v1114 = vadd.f32 0.0, %v1113
    %1115 = vmatprep.mubr.bf16.mxu0 0
    %1116 = vmatmul.mubr.bf16.gmra.mrb[0].mxu0 %v835
    %v1117 = vpop.f32.mrb[0].mxu0
    %v1118 = vadd.f32 0.0, %v1117
    %v1119 = vpop.f32.mrb[0].mxu0
    %v1120 = vadd.f32 0.0, %v1119
    %v1121 = vpop.f32.mrb[0].mxu0
    %v1122 = vadd.f32 0.0, %v1121
    %v1123 = vpop.f32.mrb[0].mxu0
    %v1124 = vadd.f32 0.0, %v1123
    %1125 = vdwg.mxu0
    %v1126 = vpack.c.bf16 %v972, %v968
    %v1127 = vpack.c.bf16 %v982, %v978
    %v1128 = vpack.c.bf16 %v992, %v988
    %v1129 = vpack.c.bf16 %v1002, %v998
    %v1130 = vpack.c.bf16 %v1012, %v1008
    %v1131 = vpack.c.bf16 %v1022, %v1018
    %v1132 = vpack.c.bf16 %v1032, %v1028
    %v1133 = vpack.c.bf16 %v1042, %v1038
    %v1134 = vpack.c.bf16 %v1052, %v1048
    %v1135 = vpack.c.bf16 %v1062, %v1058
    %v1136 = vpack.c.bf16 %v1072, %v1068
    %v1137 = vpack.c.bf16 %v1082, %v1078
    %v1138 = vpack.c.bf16 %v1092, %v1088
    %v1139 = vpack.c.bf16 %v1102, %v1098
    %v1140 = vpack.c.bf16 %v1112, %v1108
    %v1141 = vpack.c.bf16 %v1122, %v1118
    %1142 = vmatprep.subr.bf16.mxu0 0
    %1143 = vmatpush1.bf16.msra.mxu0 %v1126
    %1144 = vmatprep.subr.bf16.mxu0 0
    %1145 = vmatpush1.bf16.msra.mxu0 %v1127
    %1146 = vmatprep.subr.bf16.mxu0 0
    %1147 = vmatpush1.bf16.msra.mxu0 %v1128
    %1148 = vmatprep.subr.bf16.mxu0 0
    %1149 = vmatpush1.bf16.msra.mxu0 %v1129
    %1150 = vmatprep.subr.bf16.mxu0 0
    %1151 = vmatpush1.bf16.msra.mxu0 %v1130
    %1152 = vmatprep.subr.bf16.mxu0 0
    %1153 = vmatpush1.bf16.msra.mxu0 %v1131
    %1154 = vmatprep.subr.bf16.mxu0 0
    %1155 = vmatpush1.bf16.msra.mxu0 %v1132
    %1156 = vmatprep.subr.bf16.mxu0 0
    %1157 = vmatpush1.bf16.msra.mxu0 %v1133
    %1158 = vmatprep.subr.bf16.mxu0 0
    %1159 = vmatpush1.bf16.msra.mxu0 %v1134
    %1160 = vmatprep.subr.bf16.mxu0 0
    %1161 = vmatpush1.bf16.msra.mxu0 %v1135
    %1162 = vmatprep.subr.bf16.mxu0 0
    %1163 = vmatpush1.bf16.msra.mxu0 %v1136
    %1164 = vmatprep.subr.bf16.mxu0 0
    %1165 = vmatpush1.bf16.msra.mxu0 %v1137
    %1166 = vmatprep.subr.bf16.mxu0 0
    %1167 = vmatpush1.bf16.msra.mxu0 %v1138
    %1168 = vmatprep.subr.bf16.mxu0 0
    %1169 = vmatpush1.bf16.msra.mxu0 %v1139
    %1170 = vmatprep.subr.bf16.mxu0 0
    %1171 = vmatpush1.bf16.msra.mxu0 %v1140
    %1172 = vmatprep.subr.bf16.mxu0 0
    %1173 = vmatpush1.bf16.msra.mxu0 %v1141
    %1174 = vmatprep.mubr.bf16.mxu0 %v542
    %1175 = vmatmul.mubr.bf16.gmra.mrb[0].mxu0 %v541
    %v1176 = vpop.f32.mrb[0].mxu0
    %v1177 = vadd.f32 %v970, %v1176
    %v1178 = vpop.f32.mrb[0].mxu0
    %v1179 = vpop.f32.mrb[0].mxu0
    %v1180 = vadd.f32 %v974, %v1179
    %v1181 = vpop.f32.mrb[0].mxu0
    %1182 = vmatprep.mubr.bf16.mxu0 %v544
    %1183 = vmatmul.mubr.bf16.gmra.mrb[0].mxu0 %v543
    %v1184 = vpop.f32.mrb[0].mxu0
    %v1185 = vadd.f32 %v980, %v1184
    %v1186 = vpop.f32.mrb[0].mxu0
    %v1187 = vpop.f32.mrb[0].mxu0
    %v1188 = vadd.f32 %v984, %v1187
    %v1189 = vpop.f32.mrb[0].mxu0
    %1190 = vmatprep.mubr.bf16.mxu0 %v546
    %1191 = vmatmul.mubr.bf16.gmra.mrb[0].mxu0 %v545
    %v1192 = vpop.f32.mrb[0].mxu0
    %v1193 = vadd.f32 %v990, %v1192
    %v1194 = vpop.f32.mrb[0].mxu0
    %v1195 = vpop.f32.mrb[0].mxu0
    %v1196 = vadd.f32 %v994, %v1195
    %v1197 = vpop.f32.mrb[0].mxu0
    %1198 = vmatprep.mubr.bf16.mxu0 %v548
    %1199 = vmatmul.mubr.bf16.gmra.mrb[0].mxu0 %v547
    %v1200 = vpop.f32.mrb[0].mxu0
    %v1201 = vadd.f32 %v1000, %v1200
    %v1202 = vpop.f32.mrb[0].mxu0
    %v1203 = vpop.f32.mrb[0].mxu0
    %v1204 = vadd.f32 %v1004, %v1203
    %v1205 = vpop.f32.mrb[0].mxu0
    %1206 = vmatprep.mubr.bf16.mxu0 %v550
    %1207 = vmatmul.mubr.bf16.gmra.mrb[0].mxu0 %v549
    %v1208 = vpop.f32.mrb[0].mxu0
    %v1209 = vadd.f32 %v1010, %v1208
    %v1210 = vpop.f32.mrb[0].mxu0
    %v1211 = vpop.f32.mrb[0].mxu0
    %v1212 = vadd.f32 %v1014, %v1211
    %v1213 = vpop.f32.mrb[0].mxu0
    %1214 = vmatprep.mubr.bf16.mxu0 %v552
    %1215 = vmatmul.mubr.bf16.gmra.mrb[0].mxu0 %v551
    %v1216 = vpop.f32.mrb[0].mxu0
    %v1217 = vadd.f32 %v1020, %v1216
    %v1218 = vpop.f32.mrb[0].mxu0
    %v1219 = vpop.f32.mrb[0].mxu0
    %v1220 = vadd.f32 %v1024, %v1219
    %v1221 = vpop.f32.mrb[0].mxu0
    %1222 = vmatprep.mubr.bf16.mxu0 %v554
    %1223 = vmatmul.mubr.bf16.gmra.mrb[0].mxu0 %v553
    %v1224 = vpop.f32.mrb[0].mxu0
    %v1225 = vadd.f32 %v1030, %v1224
    %v1226 = vpop.f32.mrb[0].mxu0
    %v1227 = vpop.f32.mrb[0].mxu0
    %v1228 = vadd.f32 %v1034, %v1227
    %v1229 = vpop.f32.mrb[0].mxu0
    %1230 = vmatprep.mubr.bf16.mxu0 %v556
    %1231 = vmatmul.mubr.bf16.gmra.mrb[0].mxu0 %v555
    %v1232 = vpop.f32.mrb[0].mxu0
    %v1233 = vadd.f32 %v1040, %v1232
    %v1234 = vpop.f32.mrb[0].mxu0
    %v1235 = vpop.f32.mrb[0].mxu0
    %v1236 = vadd.f32 %v1044, %v1235
    %v1237 = vpop.f32.mrb[0].mxu0
    %1238 = vmatprep.mubr.bf16.mxu0 %v558
    %1239 = vmatmul.mubr.bf16.gmra.mrb[0].mxu0 %v557
    %v1240 = vpop.f32.mrb[0].mxu0
    %v1241 = vadd.f32 %v1050, %v1240
    %v1242 = vpop.f32.mrb[0].mxu0
    %v1243 = vpop.f32.mrb[0].mxu0
    %v1244 = vadd.f32 %v1054, %v1243
    %v1245 = vpop.f32.mrb[0].mxu0
    %1246 = vmatprep.mubr.bf16.mxu0 %v560
    %1247 = vmatmul.mubr.bf16.gmra.mrb[0].mxu0 %v559
    %v1248 = vpop.f32.mrb[0].mxu0
    %v1249 = vadd.f32 %v1060, %v1248
    %v1250 = vpop.f32.mrb[0].mxu0
    %v1251 = vpop.f32.mrb[0].mxu0
    %v1252 = vadd.f32 %v1064, %v1251
    %v1253 = vpop.f32.mrb[0].mxu0
    %1254 = vmatprep.mubr.bf16.mxu0 %v562
    %1255 = vmatmul.mubr.bf16.gmra.mrb[0].mxu0 %v561
    %v1256 = vpop.f32.mrb[0].mxu0
    %v1257 = vadd.f32 %v1070, %v1256
    %v1258 = vpop.f32.mrb[0].mxu0
    %v1259 = vpop.f32.mrb[0].mxu0
    %v1260 = vadd.f32 %v1074, %v1259
    %v1261 = vpop.f32.mrb[0].mxu0
    %1262 = vmatprep.mubr.bf16.mxu0 %v564
    %1263 = vmatmul.mubr.bf16.gmra.mrb[0].mxu0 %v563
    %v1264 = vpop.f32.mrb[0].mxu0
    %v1265 = vadd.f32 %v1080, %v1264
    %v1266 = vpop.f32.mrb[0].mxu0
    %v1267 = vpop.f32.mrb[0].mxu0
    %v1268 = vadd.f32 %v1084, %v1267
    %v1269 = vpop.f32.mrb[0].mxu0
    %1270 = vmatprep.mubr.bf16.mxu0 %v566
    %1271 = vmatmul.mubr.bf16.gmra.mrb[0].mxu0 %v565
    %v1272 = vpop.f32.mrb[0].mxu0
    %v1273 = vadd.f32 %v1090, %v1272
    %v1274 = vpop.f32.mrb[0].mxu0
    %v1275 = vpop.f32.mrb[0].mxu0
    %v1276 = vadd.f32 %v1094, %v1275
    %v1277 = vpop.f32.mrb[0].mxu0
    %1278 = vmatprep.mubr.bf16.mxu0 %v568
    %1279 = vmatmul.mubr.bf16.gmra.mrb[0].mxu0 %v567
    %v1280 = vpop.f32.mrb[0].mxu0
    %v1281 = vadd.f32 %v1100, %v1280
    %v1282 = vpop.f32.mrb[0].mxu0
    %v1283 = vpop.f32.mrb[0].mxu0
    %v1284 = vadd.f32 %v1104, %v1283
    %v1285 = vpop.f32.mrb[0].mxu0
    %1286 = vmatprep.mubr.bf16.mxu0 %v570
    %1287 = vmatmul.mubr.bf16.gmra.mrb[0].mxu0 %v569
    %v1288 = vpop.f32.mrb[0].mxu0
    %v1289 = vadd.f32 %v1110, %v1288
    %v1290 = vpop.f32.mrb[0].mxu0
    %v1291 = vpop.f32.mrb[0].mxu0
    %v1292 = vadd.f32 %v1114, %v1291
    %v1293 = vpop.f32.mrb[0].mxu0
    %1294 = vmatprep.mubr.bf16.mxu0 %v572
    %1295 = vmatmul.mubr.bf16.gmra.mrb[0].mxu0 %v571
    %v1296 = vpop.f32.mrb[0].mxu0
    %v1297 = vadd.f32 %v1120, %v1296
    %v1298 = vpop.f32.mrb[0].mxu0
    %v1299 = vpop.f32.mrb[0].mxu0
    %v1300 = vadd.f32 %v1124, %v1299
    %v1301 = vpop.f32.mrb[0].mxu0
    %1302 = vdwg.mxu0
    %v1304 = vlaneseq
    %v1305 = vshrl.u32 %v1304, 7
    %v1306 = vsub.s32 0, %v1305
    %v1307 = vrot.slane %v852, %v1306
    %v1309 = vadd.f32 %v1177, %v1307
    %v1310 = vadd.f32 %v1180, %v1307
    %v1311 = vadd.f32 %v1185, %v1307
    %v1312 = vadd.f32 %v1188, %v1307
    %v1313 = vadd.f32 %v1193, %v1307
    %v1314 = vadd.f32 %v1196, %v1307
    %v1315 = vadd.f32 %v1201, %v1307
    %v1316 = vadd.f32 %v1204, %v1307
    %v1317 = vadd.f32 %v1209, %v1307
    %v1318 = vadd.f32 %v1212, %v1307
    %v1319 = vadd.f32 %v1217, %v1307
    %v1320 = vadd.f32 %v1220, %v1307
    %v1321 = vadd.f32 %v1225, %v1307
    %v1322 = vadd.f32 %v1228, %v1307
    %v1323 = vadd.f32 %v1233, %v1307
    %v1324 = vadd.f32 %v1236, %v1307
    %v1325 = vadd.f32 %v1241, %v1307
    %v1326 = vadd.f32 %v1244, %v1307
    %v1327 = vadd.f32 %v1249, %v1307
    %v1328 = vadd.f32 %v1252, %v1307
    %v1329 = vadd.f32 %v1257, %v1307
    %v1330 = vadd.f32 %v1260, %v1307
    %v1331 = vadd.f32 %v1265, %v1307
    %v1332 = vadd.f32 %v1268, %v1307
    %v1333 = vadd.f32 %v1273, %v1307
    %v1334 = vadd.f32 %v1276, %v1307
    %v1335 = vadd.f32 %v1281, %v1307
    %v1336 = vadd.f32 %v1284, %v1307
    %v1337 = vadd.f32 %v1289, %v1307
    %v1338 = vadd.f32 %v1292, %v1307
    %v1339 = vadd.f32 %v1297, %v1307
    %v1340 = vadd.f32 %v1300, %v1307
    %v1341 = vpack.c.bf16 %v1310, %v1309
    %v1342 = vpack.c.bf16 %v1312, %v1311
    %v1343 = vpack.c.bf16 %v1314, %v1313
    %v1344 = vpack.c.bf16 %v1316, %v1315
    %v1345 = vpack.c.bf16 %v1318, %v1317
    %v1346 = vpack.c.bf16 %v1320, %v1319
    %v1347 = vpack.c.bf16 %v1322, %v1321
    %v1348 = vpack.c.bf16 %v1324, %v1323
    %v1349 = vpack.c.bf16 %v1326, %v1325
    %v1350 = vpack.c.bf16 %v1328, %v1327
    %v1351 = vpack.c.bf16 %v1330, %v1329
    %v1352 = vpack.c.bf16 %v1332, %v1331
    %v1353 = vpack.c.bf16 %v1334, %v1333
    %v1354 = vpack.c.bf16 %v1336, %v1335
    %v1355 = vpack.c.bf16 %v1338, %v1337
    %v1356 = vpack.c.bf16 %v1340, %v1339
    %v1357 = vld [vmem:[#allocation10] sm:$0xf]
    %v1358 = vld [vmem:[#allocation10 + $0x4] sm:$0xf]
    %v1359 = vld [vmem:[#allocation10 + $0x8] sm:$0xf]
    %v1360 = vld [vmem:[#allocation10 + $0xc] sm:$0xf]
    %v1361 = vld [vmem:[#allocation10 + $0x10] sm:$0xf]
    %v1362 = vld [vmem:[#allocation10 + $0x14] sm:$0xf]
    %v1363 = vld [vmem:[#allocation10 + $0x18] sm:$0xf]
    %v1364 = vld [vmem:[#allocation10 + $0x1c] sm:$0xf]
    %v1365 = vld [vmem:[#allocation10 + $0x20] sm:$0xf]
    %v1366 = vld [vmem:[#allocation10 + $0x24] sm:$0xf]
    %v1367 = vld [vmem:[#allocation10 + $0x28] sm:$0xf]
    %v1368 = vld [vmem:[#allocation10 + $0x2c] sm:$0xf]
    %v1369 = vld [vmem:[#allocation10 + $0x30] sm:$0xf]
    %v1370 = vld [vmem:[#allocation10 + $0x34] sm:$0xf]
    %v1371 = vld [vmem:[#allocation10 + $0x38] sm:$0xf]
    %v1372 = vld [vmem:[#allocation10 + $0x3c] sm:$0xf]
    %v1373 = vld [vmem:[%s7] sm:$0x1]
    %v1375 = vlaneseq
    %v1376 = vshrl.u32 %v1375, 7
    %v1377 = vsub.s32 0, %v1376
    %v1378 = vrot.slane %v1373, %v1377
    %v1396 = vunpack.c.l.b16 %v1357
    %v1397 = vunpack.c.l.b16 %v1358
    %v1398 = vunpack.c.l.b16 %v1359
    %v1399 = vunpack.c.l.b16 %v1360
    %v1400 = vunpack.c.l.b16 %v1361
    %v1401 = vunpack.c.l.b16 %v1362
    %v1402 = vunpack.c.l.b16 %v1363
    %v1403 = vunpack.c.l.b16 %v1364
    %v1404 = vunpack.c.l.b16 %v1365
    %v1405 = vunpack.c.l.b16 %v1366
    %v1406 = vunpack.c.l.b16 %v1367
    %v1407 = vunpack.c.l.b16 %v1368
    %v1408 = vunpack.c.l.b16 %v1369
    %v1409 = vunpack.c.l.b16 %v1370
    %v1410 = vunpack.c.l.b16 %v1371
    %v1411 = vunpack.c.l.b16 %v1372
    %v1412 = vpack.c.b16 %v1397, %v1396
    %v1413 = vpack.c.b16 %v1399, %v1398
    %v1414 = vpack.c.b16 %v1401, %v1400
    %v1415 = vpack.c.b16 %v1403, %v1402
    %v1416 = vpack.c.b16 %v1405, %v1404
    %v1417 = vpack.c.b16 %v1407, %v1406
    %v1418 = vpack.c.b16 %v1409, %v1408
    %v1419 = vpack.c.b16 %v1411, %v1410
    %1428 = vmatprep.subr.bf16.mxu0 0
    %1429 = vmatpush1.bf16.msra.mxu0 %v1412
    %1430 = vmatprep.subr.bf16.mxu0 0
    %1431 = vmatpush1.bf16.msra.mxu0 %v1413
    %1432 = vmatprep.subr.bf16.mxu0 0
    %1433 = vmatpush1.bf16.msra.mxu0 %v1414
    %1434 = vmatprep.subr.bf16.mxu0 0
    %1435 = vmatpush1.bf16.msra.mxu0 %v1415
    %1436 = vmatprep.subr.bf16.mxu0 0
    %1437 = vmatpush1.bf16.msra.mxu0 %v1416
    %1438 = vmatprep.subr.bf16.mxu0 0
    %1439 = vmatpush1.bf16.msra.mxu0 %v1417
    %1440 = vmatprep.subr.bf16.mxu0 0
    %1441 = vmatpush1.bf16.msra.mxu0 %v1418
    %1442 = vmatprep.subr.bf16.mxu0 0
    %1443 = vmatpush1.bf16.msra.mxu0 %v1419
    %1444 = vmatprep.subr.bf16.mxu0 0
    %1445 = vmatpush1.bf16.msra.mxu0 0
    %1446 = vmatprep.subr.bf16.mxu0 0
    %1447 = vmatpush1.bf16.msra.mxu0 0
    %1448 = vmatprep.subr.bf16.mxu0 0
    %1449 = vmatpush1.bf16.msra.mxu0 0
    %1450 = vmatprep.subr.bf16.mxu0 0
    %1451 = vmatpush1.bf16.msra.mxu0 0
    %1452 = vmatprep.subr.bf16.mxu0 0
    %1453 = vmatpush1.bf16.msra.mxu0 0
    %1454 = vmatprep.subr.bf16.mxu0 0
    %1455 = vmatpush1.bf16.msra.mxu0 0
    %1456 = vmatprep.subr.bf16.mxu0 0
    %1457 = vmatpush1.bf16.msra.mxu0 0
    %1458 = vmatprep.subr.bf16.mxu0 0
    %1459 = vmatpush1.bf16.msra.mxu0 0
    %1460 = vmatprep.mubr.bf16.mxu0 0
    %1461 = vmatmul.mubr.bf16.gmra.mrb[0].mxu0 %v1341
    %v1462 = vpop.f32.mrb[0].mxu0
    %v1463 = vadd.f32 %v1378, %v1462
    %v1464 = vpop.f32.mrb[0].mxu0
    %v1465 = vpop.f32.mrb[0].mxu0
    %v1466 = vadd.f32 %v1378, %v1465
    %v1467 = vpop.f32.mrb[0].mxu0
    %1468 = vmatprep.mubr.bf16.mxu0 0
    %1469 = vmatmul.mubr.bf16.gmra.mrb[0].mxu0 %v1342
    %v1470 = vpop.f32.mrb[0].mxu0
    %v1471 = vadd.f32 %v1378, %v1470
    %v1472 = vpop.f32.mrb[0].mxu0
    %v1473 = vpop.f32.mrb[0].mxu0
    %v1474 = vadd.f32 %v1378, %v1473
    %v1475 = vpop.f32.mrb[0].mxu0
    %1476 = vmatprep.mubr.bf16.mxu0 0
    %1477 = vmatmul.mubr.bf16.gmra.mrb[0].mxu0 %v1343
    %v1478 = vpop.f32.mrb[0].mxu0
    %v1479 = vadd.f32 %v1378, %v1478
    %v1480 = vpop.f32.mrb[0].mxu0
    %v1481 = vpop.f32.mrb[0].mxu0
    %v1482 = vadd.f32 %v1378, %v1481
    %v1483 = vpop.f32.mrb[0].mxu0
    %1484 = vmatprep.mubr.bf16.mxu0 0
    %1485 = vmatmul.mubr.bf16.gmra.mrb[0].mxu0 %v1344
    %v1486 = vpop.f32.mrb[0].mxu0
    %v1487 = vadd.f32 %v1378, %v1486
    %v1488 = vpop.f32.mrb[0].mxu0
    %v1489 = vpop.f32.mrb[0].mxu0
    %v1490 = vadd.f32 %v1378, %v1489
    %v1491 = vpop.f32.mrb[0].mxu0
    %1492 = vmatprep.mubr.bf16.mxu0 0
    %1493 = vmatmul.mubr.bf16.gmra.mrb[0].mxu0 %v1345
    %v1494 = vpop.f32.mrb[0].mxu0
    %v1495 = vadd.f32 %v1378, %v1494
    %v1496 = vpop.f32.mrb[0].mxu0
    %v1497 = vpop.f32.mrb[0].mxu0
    %v1498 = vadd.f32 %v1378, %v1497
    %v1499 = vpop.f32.mrb[0].mxu0
    %1500 = vmatprep.mubr.bf16.mxu0 0
    %1501 = vmatmul.mubr.bf16.gmra.mrb[0].mxu0 %v1346
    %v1502 = vpop.f32.mrb[0].mxu0
    %v1503 = vadd.f32 %v1378, %v1502
    %v1504 = vpop.f32.mrb[0].mxu0
    %v1505 = vpop.f32.mrb[0].mxu0
    %v1506 = vadd.f32 %v1378, %v1505
    %v1507 = vpop.f32.mrb[0].mxu0
    %1508 = vmatprep.mubr.bf16.mxu0 0
    %1509 = vmatmul.mubr.bf16.gmra.mrb[0].mxu0 %v1347
    %v1510 = vpop.f32.mrb[0].mxu0
    %v1511 = vadd.f32 %v1378, %v1510
    %v1512 = vpop.f32.mrb[0].mxu0
    %v1513 = vpop.f32.mrb[0].mxu0
    %v1514 = vadd.f32 %v1378, %v1513
    %v1515 = vpop.f32.mrb[0].mxu0
    %1516 = vmatprep.mubr.bf16.mxu0 0
    %1517 = vmatmul.mubr.bf16.gmra.mrb[0].mxu0 %v1348
    %v1518 = vpop.f32.mrb[0].mxu0
    %v1519 = vadd.f32 %v1378, %v1518
    %v1520 = vpop.f32.mrb[0].mxu0
    %v1521 = vpop.f32.mrb[0].mxu0
    %v1522 = vadd.f32 %v1378, %v1521
    %v1523 = vpop.f32.mrb[0].mxu0
    %1524 = vmatprep.mubr.bf16.mxu0 0
    %1525 = vmatmul.mubr.bf16.gmra.mrb[0].mxu0 %v1349
    %v1526 = vpop.f32.mrb[0].mxu0
    %v1527 = vadd.f32 %v1378, %v1526
    %v1528 = vpop.f32.mrb[0].mxu0
    %v1529 = vpop.f32.mrb[0].mxu0
    %v1530 = vadd.f32 %v1378, %v1529
    %v1531 = vpop.f32.mrb[0].mxu0
    %1532 = vmatprep.mubr.bf16.mxu0 0
    %1533 = vmatmul.mubr.bf16.gmra.mrb[0].mxu0 %v1350
    %v1534 = vpop.f32.mrb[0].mxu0
    %v1535 = vadd.f32 %v1378, %v1534
    %v1536 = vpop.f32.mrb[0].mxu0
    %v1537 = vpop.f32.mrb[0].mxu0
    %v1538 = vadd.f32 %v1378, %v1537
    %v1539 = vpop.f32.mrb[0].mxu0
    %1540 = vmatprep.mubr.bf16.mxu0 0
    %1541 = vmatmul.mubr.bf16.gmra.mrb[0].mxu0 %v1351
    %v1542 = vpop.f32.mrb[0].mxu0
    %v1543 = vadd.f32 %v1378, %v1542
    %v1544 = vpop.f32.mrb[0].mxu0
    %v1545 = vpop.f32.mrb[0].mxu0
    %v1546 = vadd.f32 %v1378, %v1545
    %v1547 = vpop.f32.mrb[0].mxu0
    %1548 = vmatprep.mubr.bf16.mxu0 0
    %1549 = vmatmul.mubr.bf16.gmra.mrb[0].mxu0 %v1352
    %v1550 = vpop.f32.mrb[0].mxu0
    %v1551 = vadd.f32 %v1378, %v1550
    %v1552 = vpop.f32.mrb[0].mxu0
    %v1553 = vpop.f32.mrb[0].mxu0
    %v1554 = vadd.f32 %v1378, %v1553
    %v1555 = vpop.f32.mrb[0].mxu0
    %1556 = vmatprep.mubr.bf16.mxu0 0
    %1557 = vmatmul.mubr.bf16.gmra.mrb[0].mxu0 %v1353
    %v1558 = vpop.f32.mrb[0].mxu0
    %v1559 = vadd.f32 %v1378, %v1558
    %v1560 = vpop.f32.mrb[0].mxu0
    %v1561 = vpop.f32.mrb[0].mxu0
    %v1562 = vadd.f32 %v1378, %v1561
    %v1563 = vpop.f32.mrb[0].mxu0
    %1564 = vmatprep.mubr.bf16.mxu0 0
    %1565 = vmatmul.mubr.bf16.gmra.mrb[0].mxu0 %v1354
    %v1566 = vpop.f32.mrb[0].mxu0
    %v1567 = vadd.f32 %v1378, %v1566
    %v1568 = vpop.f32.mrb[0].mxu0
    %v1569 = vpop.f32.mrb[0].mxu0
    %v1570 = vadd.f32 %v1378, %v1569
    %v1571 = vpop.f32.mrb[0].mxu0
    %1572 = vmatprep.mubr.bf16.mxu0 0
    %1573 = vmatmul.mubr.bf16.gmra.mrb[0].mxu0 %v1355
    %v1574 = vpop.f32.mrb[0].mxu0
    %v1575 = vadd.f32 %v1378, %v1574
    %v1576 = vpop.f32.mrb[0].mxu0
    %v1577 = vpop.f32.mrb[0].mxu0
    %v1578 = vadd.f32 %v1378, %v1577
    %v1579 = vpop.f32.mrb[0].mxu0
    %1580 = vmatprep.mubr.bf16.mxu0 0
    %1581 = vmatmul.mubr.bf16.gmra.mrb[0].mxu0 %v1356
    %v1582 = vpop.f32.mrb[0].mxu0
    %v1583 = vadd.f32 %v1378, %v1582
    %v1584 = vpop.f32.mrb[0].mxu0
    %v1585 = vpop.f32.mrb[0].mxu0
    %v1586 = vadd.f32 %v1378, %v1585
    %v1587 = vpop.f32.mrb[0].mxu0
    %1588 = vdwg.mxu0
    %1589 = vst [vmem:[#allocation12] sm:$0xff] %v1463
    %1590 = vst [vmem:[#allocation12 + $0x8] sm:$0xff] %v1466
    %1591 = vst [vmem:[#allocation12 + $0x10] sm:$0xff] %v1471
    %1592 = vst [vmem:[#allocation12 + $0x18] sm:$0xff] %v1474
    %1593 = vst [vmem:[#allocation12 + $0x20] sm:$0xff] %v1479
    %1594 = vst [vmem:[#allocation12 + $0x28] sm:$0xff] %v1482
    %1595 = vst [vmem:[#allocation12 + $0x30] sm:$0xff] %v1487
    %1596 = vst [vmem:[#allocation12 + $0x38] sm:$0xff] %v1490
    %1597 = vst [vmem:[#allocation12 + $0x40] sm:$0xff] %v1495
    %1598 = vst [vmem:[#allocation12 + $0x48] sm:$0xff] %v1498
    %1599 = vst [vmem:[#allocation12 + $0x50] sm:$0xff] %v1503
    %1600 = vst [vmem:[#allocation12 + $0x58] sm:$0xff] %v1506
    %1601 = vst [vmem:[#allocation12 + $0x60] sm:$0xff] %v1511
    %1602 = vst [vmem:[#allocation12 + $0x68] sm:$0xff] %v1514
    %1603 = vst [vmem:[#allocation12 + $0x70] sm:$0xff] %v1519
    %1604 = vst [vmem:[#allocation12 + $0x78] sm:$0xff] %v1522
    %1605 = vst [vmem:[#allocation12 + $0x80] sm:$0xff] %v1527
    %1606 = vst [vmem:[#allocation12 + $0x88] sm:$0xff] %v1530
    %1607 = vst [vmem:[#allocation12 + $0x90] sm:$0xff] %v1535
    %1608 = vst [vmem:[#allocation12 + $0x98] sm:$0xff] %v1538
    %1609 = vst [vmem:[#allocation12 + $0xa0] sm:$0xff] %v1543
    %1610 = vst [vmem:[#allocation12 + $0xa8] sm:$0xff] %v1546
    %1611 = vst [vmem:[#allocation12 + $0xb0] sm:$0xff] %v1551
    %1612 = vst [vmem:[#allocation12 + $0xb8] sm:$0xff] %v1554
    %1613 = vst [vmem:[#allocation12 + $0xc0] sm:$0xff] %v1559
    %1614 = vst [vmem:[#allocation12 + $0xc8] sm:$0xff] %v1562
    %1615 = vst [vmem:[#allocation12 + $0xd0] sm:$0xff] %v1567
    %1616 = vst [vmem:[#allocation12 + $0xd8] sm:$0xff] %v1570
    %1617 = vst [vmem:[#allocation12 + $0xe0] sm:$0xff] %v1575
    %1618 = vst [vmem:[#allocation12 + $0xe8] sm:$0xff] %v1578
    %1619 = vst [vmem:[#allocation12 + $0xf0] sm:$0xff] %v1583
    %1620 = vst [vmem:[#allocation12 + $0xf8] sm:$0xff] %v1586
    // Predicated region
    $region46: #{tpu_custom_call.1} parent=1 // pred_check
      _
    $region47: #{tpu_custom_call.1} parent=1 // pred_check_branch
      %1622 = sbr.rel (0) target = $region49
    $region48: #{tpu_custom_call.1} parent=1 // pred_region
      %s1624 = ssub.s32 4096, 4096
      %1625 = vsyncadd [#allocation6], %s1624
      %s1626 = sshll.u32 [#allocation12], 4
      %s1627 = int_to_ptr.vmem [resolvable:$true] %s1626
      %1632 = dma.vmem_to_hbm [thread:$0]  %s1627, 4096, %s8, [#allocation6], 128, 128, 8
    $region49: #{tpu_custom_call.1} parent=1 // pred_fallthru
      _
    // Predicated region
    $region50: #{tpu_custom_call.1} parent=1 // pred_check
      _
    $region51: #{tpu_custom_call.1} parent=1 // pred_check_branch
      %1634 = sbr.rel (0) target = $region53
    $region52: #{tpu_custom_call.1} parent=1 // pred_region
      %1635 = dma.done [#allocation6], 4096
    $region53: #{tpu_custom_call.1} parent=1 // pred_fallthru
      _
    %1636 = vsyncpa [#allocation5], 1
    %1637 = vsyncpa [#allocation8], 1
    %1638 = vsyncpa [#allocation11], 1
    %1639 = vsyncpa [#allocation6], 1
  %1640 = vsyncmov [#allocation3]
  %s1641 = vpop.sfrf %1640
  %p1642 = scmp.eq.s32.totalorder %s1641, 0
  %p1643 = pneg %p1642
  %1645 = shalt.err (%p1643)

</llo_original>
